<compile_context>
chip_gen: v7x
topology: tpu7x:2x2x1
jax: 0.10.0
libtpu: 0.0.40
codegen_flags: <defaults>
</compile_context>

<pallas_src>
import jax
import jax.numpy as jnp
import numpy as np
from jax.experimental import pallas as pl
from jax.experimental.pallas import tpu as pltpu  # noqa: F401  (TPU-specific tuning hooks)

# ---- hyperparameters consistent with cINN.__init__ ----
NDIM_X = 3
NDIM_PAD_X = 5
NDIM_Y = 2
N_BLOCKS = 2
CLAMP = 1.0                    # exponent_clamping
INTERNAL = 128                 # FullyConnected internal_size
DIMS_IN = NDIM_X + NDIM_PAD_X  # = 8
SPLIT1 = DIMS_IN // 2          # = 4
SPLIT2 = DIMS_IN - SPLIT1      # = 4
BATCH = 8
NEG_SLOPE = 0.01               # nn.LeakyReLU default
STATE_W = 16                   # lane-packed state width: [x1 | x2 | y | pad | 1.0]
BIAS_LANE = STATE_W - 1        # constant-1.0 lane carrying the folded b1
N_SUBNETS = 2 * N_BLOCKS       # subnet call order: (blk0: subnet2, subnet1), (blk1: ...)

# ---- atan constants with CLAMP*0.636 folded in (Cephes f32 atan, ~1e-7 abs error) ----
_ATAN_S = CLAMP * 0.636
_ATAN_C4 = _ATAN_S * 8.05374449538e-2
_ATAN_C3 = _ATAN_S * -1.38776856032e-1
_ATAN_C2 = _ATAN_S * 1.99777106478e-1
_ATAN_C1 = _ATAN_S * -3.33329491539e-1
_ATAN_Y_BIG = _ATAN_S * float(np.pi / 2)
_ATAN_Y_MID = _ATAN_S * float(np.pi / 4)
_T3P8 = 2.414213562373095      # tan(3*pi/8)
_TP8 = 0.4142135623730950      # tan(pi/8)


# -------------------- in-kernel helpers --------------------
def _atan_scaled(x):
    """CLAMP*0.636*atan(x) with ONE EUP reciprocal (+1 Newton step).  Exactly 0 at x == 0,
    which keeps the zero-padded / condition / bias lanes untouched (exp(0) == 1)."""
    ax = jnp.abs(x)
    big = ax > _T3P8
    mid = jnp.logical_and(ax > _TP8, jnp.logical_not(big))
    # shared denominator: ax on the `big` branch, ax+1 otherwise -> always >= 1 where used,
    # so no Inf/NaN anywhere (the previous version's masked-Inf concern is gone).
    d = jnp.where(big, ax, ax + 1.0)
    r = pl.reciprocal(d, approx=True)
    r = r * (2.0 - d * r)                               # one Newton refinement
    xr = jnp.where(big, -r, jnp.where(mid, (ax - 1.0) * r, ax))
    yofs = jnp.where(big, jnp.float32(_ATAN_Y_BIG),
                     jnp.where(mid, jnp.float32(_ATAN_Y_MID), jnp.float32(0.0)))
    z = xr * xr
    poly = ((((_ATAN_C4 * z + _ATAN_C3) * z + _ATAN_C2) * z + _ATAN_C1) * z + _ATAN_S) * xr
    v = yofs + poly
    return jnp.where(x < 0, -v, v)


def _leaky(v):
    # max-form leaky ReLU: 2 VPU ops, identical to where(v>=0, v, a*v) for 0 < a < 1.
    return jnp.maximum(v, NEG_SLOPE * v)


# -------------------- kernel --------------------
def cinn_kernel(st_ref, w1_ref, w23_ref, ball_ref, w4_ref, out_ref):
    st = st_ref[...]                                   # (B, 16) = [x1 | x2 | y | 0 | 1.0]
    s_acc = jnp.zeros(st.shape, jnp.float32)

    # Fully unrolled over the 2*N_BLOCKS subnet applications; all weights are VMEM-resident
    # and indexed with static leading indices (no per-step pipelining / DMA / lane slicing).
    for k in range(N_SUBNETS):
        h = jnp.dot(st, w1_ref[k], preferred_element_type=jnp.float32)   # b1 via the 1.0 lane
        h = _leaky(h)
        h = jnp.dot(h, w23_ref[k, 0], preferred_element_type=jnp.float32) + ball_ref[k, 0:1, :]
        h = _leaky(h)
        h = jnp.dot(h, w23_ref[k, 1], preferred_element_type=jnp.float32) + ball_ref[k, 1:2, :]
        h = _leaky(h)
        # scale / translate heads: two back-to-back MXU pushes against one fused weight array.
        # s_raw / t are exactly 0 on every lane not being transformed (zero-padded weights), so
        # the update below leaves the other half, the condition y, the pad and the 1.0 lane alone.
        s_raw = (jnp.dot(h, w4_ref[k, 0], preferred_element_type=jnp.float32)
                 + ball_ref[k, 2:3, :STATE_W])
        t = (jnp.dot(h, w4_ref[k, 1], preferred_element_type=jnp.float32)
             + ball_ref[k, 3:4, :STATE_W])
        s = _atan_scaled(s_raw)                        # = CLAMP*0.636*atan(s_raw)
        st = jnp.exp(s) * st + t
        s_acc = s_acc + s                              # defer the cross-lane reduction

    jac = jnp.sum(s_acc, axis=1, keepdims=True)        # single XLU lane reduction
    lane = jax.lax.broadcasted_iota(jnp.int32, st.shape, 1)
    # single lane-packed store: [z (8 lanes) | log_jac_det (1 lane) | 0]
    out_ref[...] = jnp.where(lane < DIMS_IN, st, 0.0) + jnp.where(lane == DIMS_IN, jac, 0.0)


# -------------------- parameter setup (deterministic, synthetic) --------------------
def init_subnet(key, d_in, d_out):
    """Mimics shapes of FullyConnected(d_in, d_out); PyTorch-like uniform init."""
    ks = jax.random.split(key, 8)

    def lin(kw, kb, fi, fo):
        bound = 1.0 / np.sqrt(fi)
        W = jax.random.uniform(kw, (fi, fo), jnp.float32, -bound, bound)
        b = jax.random.uniform(kb, (fo,), jnp.float32, -bound, bound)
        return W, b

    W1, b1 = lin(ks[0], ks[1], d_in, INTERNAL)
    W2, b2 = lin(ks[2], ks[3], INTERNAL, INTERNAL)
    W3, b3 = lin(ks[4], ks[5], INTERNAL, INTERNAL)
    W4, b4 = lin(ks[6], ks[7], INTERNAL, d_out)
    return dict(W1=W1, b1=b1, W2=W2, b2=b2, W3=W3, b3=b3, W4=W4, b4=b4)


def pack_params(blocks):
    """Host-side (numpy, run ONCE) packing of per-subnet weights in call order
    (subnet2 then subnet1 per block) into the lane-packed state layout.
    Returns 4 stacked arrays -> 4 weight DMAs total."""
    W1P, W23, BALL, W4F = [], [], [], []
    for blk in blocks:
        for name in ('subnet2', 'subnet1'):
            p = blk[name]
            if name == 'subnet2':
                d_data, data_off = SPLIT2, SPLIT1   # reads x2   (lanes 4..7)
                half, tgt_off = SPLIT1, 0           # writes x1  (lanes 0..3)
            else:
                d_data, data_off = SPLIT1, 0        # reads y1   (lanes 0..3)
                half, tgt_off = SPLIT2, SPLIT1      # writes x2  (lanes 4..7)

            w1 = np.asarray(p['W1'], np.float32); b1 = np.asarray(p['b1'], np.float32)
            w2 = np.asarray(p['W2'], np.float32); b2 = np.asarray(p['b2'], np.float32)
            w3 = np.asarray(p['W3'], np.float32); b3 = np.asarray(p['b3'], np.float32)
            w4 = np.asarray(p['W4'], np.float32); b4 = np.asarray(p['b4'], np.float32)

            # first layer: data rows at the input-half's lanes, condition rows at y's lanes,
            # bias b1 folded into the constant-1.0 state lane.
            w1p = np.zeros((STATE_W, INTERNAL), np.float32)
            w1p[data_off:data_off + d_data] = w1[:d_data]
            w1p[DIMS_IN:DIMS_IN + NDIM_Y] = w1[d_data:]
            w1p[BIAS_LANE] = b1

            # hidden layers stacked on a leading index (single DMA).
            w23 = np.stack([w2, w3], axis=0)                    # (2, 128, 128)

            # last layer: scale / translate heads stacked on a leading index, columns
            # zero-padded onto the lanes of the half being transformed.
            w4f = np.zeros((2, INTERNAL, STATE_W), np.float32)
            w4f[0, :, tgt_off:tgt_off + half] = w4[:, :half]    # scale head
            w4f[1, :, tgt_off:tgt_off + half] = w4[:, half:]    # translate head

            # remaining biases in one (4, 128) slab: [b2; b3; b4s(pad); b4t(pad)].
            ball = np.zeros((4, INTERNAL), np.float32)
            ball[0] = b2
            ball[1] = b3
            ball[2, tgt_off:tgt_off + half] = b4[:half]
            ball[3, tgt_off:tgt_off + half] = b4[half:]

            W1P.append(w1p); W23.append(w23); BALL.append(ball); W4F.append(w4f)

    return (np.stack(W1P),   # (N_SUBNETS, 16, 128)
            np.stack(W23),   # (N_SUBNETS, 2, 128, 128)
            np.stack(BALL),  # (N_SUBNETS, 4, 128)
            np.stack(W4F))   # (N_SUBNETS, 2, 128, 16)


# -------------------- wrapper --------------------
@jax.jit
def cinn_forward(x, y, w1p, w23, ball, w4f):
    """Forward pass: returns (z, log_jac_det).  Packed weights come from pack_params()."""
    x = x.astype(jnp.float32)
    y = y.astype(jnp.float32)
    b = x.shape[0]
    # lane-packed state: [x1 | x2 | y | zeros | 1.0 (bias lane)]
    st0 = jnp.concatenate(
        [x, y,
         jnp.zeros((b, BIAS_LANE - DIMS_IN - NDIM_Y), jnp.float32),
         jnp.ones((b, 1), jnp.float32)], axis=1)

    # No grid: single invocation, whole arrays land in VMEM (~0.6 MB f32 weights).
    # For large deployment batches: grow rows toward ~256 first; only beyond that add a
    # leading "parallel" batch-tile grid axis (weight index_maps ignoring it) to engage
    # v7x's 2nd TensorCore.  Never turn the 4-subnet loop into a grid axis.
    out = pl.pallas_call(
        cinn_kernel,
        out_shape=jax.ShapeDtypeStruct((b, STATE_W), jnp.float32),
    )(st0, w1p, w23, ball, w4f)

    z = out[:, :DIMS_IN]
    jac = out[:, DIMS_IN]
    return z, jac


# -------------------- pure-JAX reference (semantics check) --------------------
def cinn_reference(x, y, blocks):
    hp = jax.lax.Precision.HIGHEST

    def leaky(v):
        return jnp.where(v >= 0, v, NEG_SLOPE * v)

    def subnet(u, p):
        h = leaky(jnp.dot(u, p['W1'], precision=hp) + p['b1'])
        h = leaky(jnp.dot(h, p['W2'], precision=hp) + p['b2'])
        h = leaky(jnp.dot(h, p['W3'], precision=hp) + p['b3'])
        return jnp.dot(h, p['W4'], precision=hp) + p['b4']

    jac = jnp.zeros((x.shape[0],), jnp.float32)
    for blk in blocks:
        x1, x2 = x[:, :SPLIT1], x[:, SPLIT1:]
        a2 = subnet(jnp.concatenate([x2, y], axis=1), blk['subnet2'])
        s2 = CLAMP * 0.636 * jnp.arctan(a2[:, :SPLIT1])
        t2 = a2[:, SPLIT1:]
        y1 = jnp.exp(s2) * x1 + t2
        jac = jac + jnp.sum(s2, axis=1)
        a1 = subnet(jnp.concatenate([y1, y], axis=1), blk['subnet1'])
        s1 = CLAMP * 0.636 * jnp.arctan(a1[:, :SPLIT2])
        t1 = a1[:, SPLIT2:]
        y2 = jnp.exp(s1) * x2 + t1
        jac = jac + jnp.sum(s1, axis=1)
        x = jnp.concatenate([y1, y2], axis=1)
    return x, jac


if __name__ == "__main__":
    key = jax.random.PRNGKey(0)
    kx, ky, kp = jax.random.split(key, 3)
    x = jax.random.normal(kx, (BATCH, DIMS_IN), jnp.float32)
    y = jax.random.normal(ky, (BATCH, NDIM_Y), jnp.float32)

    pkeys = jax.random.split(kp, N_BLOCKS * 2)
    blocks = []
    for i in range(N_BLOCKS):
        blocks.append({
            # subnet1: FullyConnected(split1 + ndim_y, 2*split2)
            'subnet1': init_subnet(pkeys[2 * i], SPLIT1 + NDIM_Y, 2 * SPLIT2),
            # subnet2: FullyConnected(split2 + ndim_y, 2*split1)
            'subnet2': init_subnet(pkeys[2 * i + 1], SPLIT2 + NDIM_Y, 2 * SPLIT1),
        })

    # Pack / pad weights ONCE on the host; a deployment keeps these resident on device.
    packed = jax.tree_util.tree_map(jnp.asarray, pack_params(blocks))

    z, jac = cinn_forward(x, y, *packed)
    jax.block_until_ready((z, jac))

    z_ref, jac_ref = cinn_reference(x, y, blocks)
    np.testing.assert_allclose(np.asarray(z), np.asarray(z_ref), rtol=1e-3, atol=1e-3)
    np.testing.assert_allclose(np.asarray(jac), np.asarray(jac_ref), rtol=1e-3, atol=1e-3)

    print("KERNEL_OK")
</pallas_src>

<mosaic_0001>
module attributes {stable_mosaic.version = 11 : i64} {
  func.func @cinn_kernel(%arg0: memref<8x16xf32, #tpu.memory_space<vmem>>, %arg1: memref<4x16x128xf32, #tpu.memory_space<vmem>>, %arg2: memref<4x2x128x128xf32, #tpu.memory_space<vmem>>, %arg3: memref<4x4x128xf32, #tpu.memory_space<vmem>>, %arg4: memref<4x2x128x16xf32, #tpu.memory_space<vmem>>, %arg5: memref<8x16xf32, #tpu.memory_space<vmem>>) attributes {dimension_semantics = [], scalar_prefetch = 0 : i64, scratch_operands = 0 : i64, tpu.core_type = #tpu.core_type<tc>} {
    %c0 = arith.constant 0 : index
    %c0_0 = arith.constant 0 : index
    %0 = vector.load %arg0[%c0, %c0_0] : memref<8x16xf32, #tpu.memory_space<vmem>>, vector<8x16xf32>
    %cst = arith.constant 0.000000e+00 : f32
    %1 = vector.broadcast %cst : f32 to vector<8x16xf32>
    %c0_1 = arith.constant 0 : index
    %c0_2 = arith.constant 0 : index
    %c0_3 = arith.constant 0 : index
    %2 = vector.load %arg1[%c0_1, %c0_2, %c0_3] : memref<4x16x128xf32, #tpu.memory_space<vmem>>, vector<1x16x128xf32>
    %3 = vector.shape_cast %2 : vector<1x16x128xf32> to vector<16x128xf32>
    %cst_4 = arith.constant dense<0.000000e+00> : vector<8x128xf32>
    %4 = tpu.matmul %0, %3, %cst_4 {dimension_numbers = #tpu.dot_dimension_numbers<[1], [0], [0], [1], [0, 0, 1, 1], [], []>} : vector<8x16xf32>, vector<16x128xf32>, vector<8x128xf32> -> vector<8x128xf32>
    %cst_5 = arith.constant 0.00999999977 : f32
    %5 = vector.broadcast %cst_5 : f32 to vector<8x128xf32>
    %6 = arith.mulf %5, %4 : vector<8x128xf32>
    %7 = arith.maximumf %4, %6 : vector<8x128xf32>
    %c0_6 = arith.constant 0 : index
    %c0_7 = arith.constant 0 : index
    %c0_8 = arith.constant 0 : index
    %c0_9 = arith.constant 0 : index
    %8 = vector.load %arg2[%c0_6, %c0_7, %c0_8, %c0_9] : memref<4x2x128x128xf32, #tpu.memory_space<vmem>>, vector<1x1x128x128xf32>
    %9 = vector.shape_cast %8 : vector<1x1x128x128xf32> to vector<128x128xf32>
    %cst_10 = arith.constant dense<0.000000e+00> : vector<8x128xf32>
    %10 = tpu.matmul %7, %9, %cst_10 {dimension_numbers = #tpu.dot_dimension_numbers<[1], [0], [0], [1], [0, 0, 1, 1], [], []>} : vector<8x128xf32>, vector<128x128xf32>, vector<8x128xf32> -> vector<8x128xf32>
    %c0_11 = arith.constant 0 : index
    %c0_12 = arith.constant 0 : index
    %c0_13 = arith.constant 0 : index
    %11 = vector.load %arg3[%c0_11, %c0_12, %c0_13] : memref<4x4x128xf32, #tpu.memory_space<vmem>>, vector<1x1x128xf32>
    %12 = vector.shape_cast %11 : vector<1x1x128xf32> to vector<1x128xf32>
    %13 = vector.broadcast %12 : vector<1x128xf32> to vector<8x128xf32>
    %14 = arith.addf %10, %13 : vector<8x128xf32>
    %cst_14 = arith.constant 0.00999999977 : f32
    %15 = vector.broadcast %cst_14 : f32 to vector<8x128xf32>
    %16 = arith.mulf %15, %14 : vector<8x128xf32>
    %17 = arith.maximumf %14, %16 : vector<8x128xf32>
    %c0_15 = arith.constant 0 : index
    %c1 = arith.constant 1 : index
    %c0_16 = arith.constant 0 : index
    %c0_17 = arith.constant 0 : index
    %18 = vector.load %arg2[%c0_15, %c1, %c0_16, %c0_17] : memref<4x2x128x128xf32, #tpu.memory_space<vmem>>, vector<1x1x128x128xf32>
    %19 = vector.shape_cast %18 : vector<1x1x128x128xf32> to vector<128x128xf32>
    %cst_18 = arith.constant dense<0.000000e+00> : vector<8x128xf32>
    %20 = tpu.matmul %17, %19, %cst_18 {dimension_numbers = #tpu.dot_dimension_numbers<[1], [0], [0], [1], [0, 0, 1, 1], [], []>} : vector<8x128xf32>, vector<128x128xf32>, vector<8x128xf32> -> vector<8x128xf32>
    %c0_19 = arith.constant 0 : index
    %c1_20 = arith.constant 1 : index
    %c0_21 = arith.constant 0 : index
    %21 = vector.load %arg3[%c0_19, %c1_20, %c0_21] : memref<4x4x128xf32, #tpu.memory_space<vmem>>, vector<1x1x128xf32>
    %22 = vector.shape_cast %21 : vector<1x1x128xf32> to vector<1x128xf32>
    %23 = vector.broadcast %22 : vector<1x128xf32> to vector<8x128xf32>
    %24 = arith.addf %20, %23 : vector<8x128xf32>
    %cst_22 = arith.constant 0.00999999977 : f32
    %25 = vector.broadcast %cst_22 : f32 to vector<8x128xf32>
    %26 = arith.mulf %25, %24 : vector<8x128xf32>
    %27 = arith.maximumf %24, %26 : vector<8x128xf32>
    %c0_23 = arith.constant 0 : index
    %c0_24 = arith.constant 0 : index
    %c0_25 = arith.constant 0 : index
    %c0_26 = arith.constant 0 : index
    %28 = vector.load %arg4[%c0_23, %c0_24, %c0_25, %c0_26] : memref<4x2x128x16xf32, #tpu.memory_space<vmem>>, vector<1x1x128x16xf32>
    %29 = vector.shape_cast %28 : vector<1x1x128x16xf32> to vector<128x16xf32>
    %cst_27 = arith.constant dense<0.000000e+00> : vector<8x16xf32>
    %30 = tpu.matmul %27, %29, %cst_27 {dimension_numbers = #tpu.dot_dimension_numbers<[1], [0], [0], [1], [0, 0, 1, 1], [], []>} : vector<8x128xf32>, vector<128x16xf32>, vector<8x16xf32> -> vector<8x16xf32>
    %c0_28 = arith.constant 0 : index
    %c2 = arith.constant 2 : index
    %c0_29 = arith.constant 0 : index
    %31 = vector.load %arg3[%c0_28, %c2, %c0_29] : memref<4x4x128xf32, #tpu.memory_space<vmem>>, vector<1x1x16xf32>
    %32 = vector.shape_cast %31 : vector<1x1x16xf32> to vector<1x16xf32>
    %33 = vector.broadcast %32 : vector<1x16xf32> to vector<8x16xf32>
    %34 = arith.addf %30, %33 : vector<8x16xf32>
    %c0_30 = arith.constant 0 : index
    %c1_31 = arith.constant 1 : index
    %c0_32 = arith.constant 0 : index
    %c0_33 = arith.constant 0 : index
    %35 = vector.load %arg4[%c0_30, %c1_31, %c0_32, %c0_33] : memref<4x2x128x16xf32, #tpu.memory_space<vmem>>, vector<1x1x128x16xf32>
    %36 = vector.shape_cast %35 : vector<1x1x128x16xf32> to vector<128x16xf32>
    %cst_34 = arith.constant dense<0.000000e+00> : vector<8x16xf32>
    %37 = tpu.matmul %27, %36, %cst_34 {dimension_numbers = #tpu.dot_dimension_numbers<[1], [0], [0], [1], [0, 0, 1, 1], [], []>} : vector<8x128xf32>, vector<128x16xf32>, vector<8x16xf32> -> vector<8x16xf32>
    %c0_35 = arith.constant 0 : index
    %c3 = arith.constant 3 : index
    %c0_36 = arith.constant 0 : index
    %38 = vector.load %arg3[%c0_35, %c3, %c0_36] : memref<4x4x128xf32, #tpu.memory_space<vmem>>, vector<1x1x16xf32>
    %39 = vector.shape_cast %38 : vector<1x1x16xf32> to vector<1x16xf32>
    %40 = vector.broadcast %39 : vector<1x16xf32> to vector<8x16xf32>
    %41 = arith.addf %37, %40 : vector<8x16xf32>
    %42 = math.absf %34 : vector<8x16xf32>
    %cst_37 = arith.constant 2.41421366 : f32
    %43 = vector.broadcast %cst_37 : f32 to vector<8x16xf32>
    %44 = arith.cmpf ogt, %42, %43 : vector<8x16xf32>
    %cst_38 = arith.constant 0.414213568 : f32
    %45 = vector.broadcast %cst_38 : f32 to vector<8x16xf32>
    %46 = arith.cmpf ogt, %42, %45 : vector<8x16xf32>
    %cst_39 = arith.constant dense<true> : vector<8x16xi1>
    %47 = arith.xori %44, %cst_39 : vector<8x16xi1>
    %48 = arith.andi %46, %47 : vector<8x16xi1>
    %cst_40 = arith.constant 1.000000e+00 : f32
    %49 = vector.broadcast %cst_40 : f32 to vector<8x16xf32>
    %50 = arith.addf %42, %49 : vector<8x16xf32>
    %51 = arith.select %44, %42, %50 : vector<8x16xi1>, vector<8x16xf32>
    %52 = tpu.reciprocal %51 {approx = true} : vector<8x16xf32> -> vector<8x16xf32>
    %53 = arith.mulf %51, %52 : vector<8x16xf32>
    %cst_41 = arith.constant 2.000000e+00 : f32
    %54 = vector.broadcast %cst_41 : f32 to vector<8x16xf32>
    %55 = arith.subf %54, %53 : vector<8x16xf32>
    %56 = arith.mulf %52, %55 : vector<8x16xf32>
    %cst_42 = arith.constant 0.000000e+00 : f32
    %57 = vector.broadcast %cst_42 : f32 to vector<8x16xf32>
    %58 = arith.subf %57, %56 : vector<8x16xf32>
    %cst_43 = arith.constant 1.000000e+00 : f32
    %59 = vector.broadcast %cst_43 : f32 to vector<8x16xf32>
    %60 = arith.subf %42, %59 : vector<8x16xf32>
    %61 = arith.mulf %60, %56 : vector<8x16xf32>
    %62 = arith.select %48, %61, %42 : vector<8x16xi1>, vector<8x16xf32>
    %63 = arith.select %44, %58, %62 : vector<8x16xi1>, vector<8x16xf32>
    %cst_44 = arith.constant 0.499513239 : f32
    %cst_45 = arith.constant 0.000000e+00 : f32
    %64 = vector.broadcast %cst_44 : f32 to vector<8x16xf32>
    %65 = vector.broadcast %cst_45 : f32 to vector<8x16xf32>
    %66 = arith.select %48, %64, %65 : vector<8x16xi1>, vector<8x16xf32>
    %cst_46 = arith.constant 0.999026477 : f32
    %67 = vector.broadcast %cst_46 : f32 to vector<8x16xf32>
    %68 = arith.select %44, %67, %66 : vector<8x16xi1>, vector<8x16xf32>
    %69 = arith.mulf %63, %63 : vector<8x16xf32>
    %cst_47 = arith.constant 0.051221814 : f32
    %70 = vector.broadcast %cst_47 : f32 to vector<8x16xf32>
    %71 = arith.mulf %70, %69 : vector<8x16xf32>
    %cst_48 = arith.constant -0.0882620811 : f32
    %72 = vector.broadcast %cst_48 : f32 to vector<8x16xf32>
    %73 = arith.addf %71, %72 : vector<8x16xf32>
    %74 = arith.mulf %73, %69 : vector<8x16xf32>
    %cst_49 = arith.constant 0.127058238 : f32
    %75 = vector.broadcast %cst_49 : f32 to vector<8x16xf32>
    %76 = arith.addf %74, %75 : vector<8x16xf32>
    %77 = arith.mulf %76, %69 : vector<8x16xf32>
    %cst_50 = arith.constant -0.211997554 : f32
    %78 = vector.broadcast %cst_50 : f32 to vector<8x16xf32>
    %79 = arith.addf %77, %78 : vector<8x16xf32>
    %80 = arith.mulf %79, %69 : vector<8x16xf32>
    %cst_51 = arith.constant 0.635999977 : f32
    %81 = vector.broadcast %cst_51 : f32 to vector<8x16xf32>
    %82 = arith.addf %80, %81 : vector<8x16xf32>
    %83 = arith.mulf %82, %63 : vector<8x16xf32>
    %84 = arith.addf %68, %83 : vector<8x16xf32>
    %cst_52 = arith.constant 0.000000e+00 : f32
    %85 = vector.broadcast %cst_52 : f32 to vector<8x16xf32>
    %86 = arith.cmpf olt, %34, %85 : vector<8x16xf32>
    %cst_53 = arith.constant 0.000000e+00 : f32
    %87 = vector.broadcast %cst_53 : f32 to vector<8x16xf32>
    %88 = arith.subf %87, %84 : vector<8x16xf32>
    %89 = arith.select %86, %88, %84 : vector<8x16xi1>, vector<8x16xf32>
    %90 = math.exp %89 : vector<8x16xf32>
    %91 = arith.mulf %90, %0 : vector<8x16xf32>
    %92 = arith.addf %91, %41 : vector<8x16xf32>
    %93 = arith.addf %1, %89 : vector<8x16xf32>
    %c1_54 = arith.constant 1 : index
    %c0_55 = arith.constant 0 : index
    %c0_56 = arith.constant 0 : index
    %94 = vector.load %arg1[%c1_54, %c0_55, %c0_56] : memref<4x16x128xf32, #tpu.memory_space<vmem>>, vector<1x16x128xf32>
    %95 = vector.shape_cast %94 : vector<1x16x128xf32> to vector<16x128xf32>
    %cst_57 = arith.constant dense<0.000000e+00> : vector<8x128xf32>
    %96 = tpu.matmul %92, %95, %cst_57 {dimension_numbers = #tpu.dot_dimension_numbers<[1], [0], [0], [1], [0, 0, 1, 1], [], []>} : vector<8x16xf32>, vector<16x128xf32>, vector<8x128xf32> -> vector<8x128xf32>
    %cst_58 = arith.constant 0.00999999977 : f32
    %97 = vector.broadcast %cst_58 : f32 to vector<8x128xf32>
    %98 = arith.mulf %97, %96 : vector<8x128xf32>
    %99 = arith.maximumf %96, %98 : vector<8x128xf32>
    %c1_59 = arith.constant 1 : index
    %c0_60 = arith.constant 0 : index
    %c0_61 = arith.constant 0 : index
    %c0_62 = arith.constant 0 : index
    %100 = vector.load %arg2[%c1_59, %c0_60, %c0_61, %c0_62] : memref<4x2x128x128xf32, #tpu.memory_space<vmem>>, vector<1x1x128x128xf32>
    %101 = vector.shape_cast %100 : vector<1x1x128x128xf32> to vector<128x128xf32>
    %cst_63 = arith.constant dense<0.000000e+00> : vector<8x128xf32>
    %102 = tpu.matmul %99, %101, %cst_63 {dimension_numbers = #tpu.dot_dimension_numbers<[1], [0], [0], [1], [0, 0, 1, 1], [], []>} : vector<8x128xf32>, vector<128x128xf32>, vector<8x128xf32> -> vector<8x128xf32>
    %c1_64 = arith.constant 1 : index
    %c0_65 = arith.constant 0 : index
    %c0_66 = arith.constant 0 : index
    %103 = vector.load %arg3[%c1_64, %c0_65, %c0_66] : memref<4x4x128xf32, #tpu.memory_space<vmem>>, vector<1x1x128xf32>
    %104 = vector.shape_cast %103 : vector<1x1x128xf32> to vector<1x128xf32>
    %105 = vector.broadcast %104 : vector<1x128xf32> to vector<8x128xf32>
    %106 = arith.addf %102, %105 : vector<8x128xf32>
    %cst_67 = arith.constant 0.00999999977 : f32
    %107 = vector.broadcast %cst_67 : f32 to vector<8x128xf32>
    %108 = arith.mulf %107, %106 : vector<8x128xf32>
    %109 = arith.maximumf %106, %108 : vector<8x128xf32>
    %c1_68 = arith.constant 1 : index
    %c1_69 = arith.constant 1 : index
    %c0_70 = arith.constant 0 : index
    %c0_71 = arith.constant 0 : index
    %110 = vector.load %arg2[%c1_68, %c1_69, %c0_70, %c0_71] : memref<4x2x128x128xf32, #tpu.memory_space<vmem>>, vector<1x1x128x128xf32>
    %111 = vector.shape_cast %110 : vector<1x1x128x128xf32> to vector<128x128xf32>
    %cst_72 = arith.constant dense<0.000000e+00> : vector<8x128xf32>
    %112 = tpu.matmul %109, %111, %cst_72 {dimension_numbers = #tpu.dot_dimension_numbers<[1], [0], [0], [1], [0, 0, 1, 1], [], []>} : vector<8x128xf32>, vector<128x128xf32>, vector<8x128xf32> -> vector<8x128xf32>
    %c1_73 = arith.constant 1 : index
    %c1_74 = arith.constant 1 : index
    %c0_75 = arith.constant 0 : index
    %113 = vector.load %arg3[%c1_73, %c1_74, %c0_75] : memref<4x4x128xf32, #tpu.memory_space<vmem>>, vector<1x1x128xf32>
    %114 = vector.shape_cast %113 : vector<1x1x128xf32> to vector<1x128xf32>
    %115 = vector.broadcast %114 : vector<1x128xf32> to vector<8x128xf32>
    %116 = arith.addf %112, %115 : vector<8x128xf32>
    %cst_76 = arith.constant 0.00999999977 : f32
    %117 = vector.broadcast %cst_76 : f32 to vector<8x128xf32>
    %118 = arith.mulf %117, %116 : vector<8x128xf32>
    %119 = arith.maximumf %116, %118 : vector<8x128xf32>
    %c1_77 = arith.constant 1 : index
    %c0_78 = arith.constant 0 : index
    %c0_79 = arith.constant 0 : index
    %c0_80 = arith.constant 0 : index
    %120 = vector.load %arg4[%c1_77, %c0_78, %c0_79, %c0_80] : memref<4x2x128x16xf32, #tpu.memory_space<vmem>>, vector<1x1x128x16xf32>
    %121 = vector.shape_cast %120 : vector<1x1x128x16xf32> to vector<128x16xf32>
    %cst_81 = arith.constant dense<0.000000e+00> : vector<8x16xf32>
    %122 = tpu.matmul %119, %121, %cst_81 {dimension_numbers = #tpu.dot_dimension_numbers<[1], [0], [0], [1], [0, 0, 1, 1], [], []>} : vector<8x128xf32>, vector<128x16xf32>, vector<8x16xf32> -> vector<8x16xf32>
    %c1_82 = arith.constant 1 : index
    %c2_83 = arith.constant 2 : index
    %c0_84 = arith.constant 0 : index
    %123 = vector.load %arg3[%c1_82, %c2_83, %c0_84] : memref<4x4x128xf32, #tpu.memory_space<vmem>>, vector<1x1x16xf32>
    %124 = vector.shape_cast %123 : vector<1x1x16xf32> to vector<1x16xf32>
    %125 = vector.broadcast %124 : vector<1x16xf32> to vector<8x16xf32>
    %126 = arith.addf %122, %125 : vector<8x16xf32>
    %c1_85 = arith.constant 1 : index
    %c1_86 = arith.constant 1 : index
    %c0_87 = arith.constant 0 : index
    %c0_88 = arith.constant 0 : index
    %127 = vector.load %arg4[%c1_85, %c1_86, %c0_87, %c0_88] : memref<4x2x128x16xf32, #tpu.memory_space<vmem>>, vector<1x1x128x16xf32>
    %128 = vector.shape_cast %127 : vector<1x1x128x16xf32> to vector<128x16xf32>
    %cst_89 = arith.constant dense<0.000000e+00> : vector<8x16xf32>
    %129 = tpu.matmul %119, %128, %cst_89 {dimension_numbers = #tpu.dot_dimension_numbers<[1], [0], [0], [1], [0, 0, 1, 1], [], []>} : vector<8x128xf32>, vector<128x16xf32>, vector<8x16xf32> -> vector<8x16xf32>
    %c1_90 = arith.constant 1 : index
    %c3_91 = arith.constant 3 : index
    %c0_92 = arith.constant 0 : index
    %130 = vector.load %arg3[%c1_90, %c3_91, %c0_92] : memref<4x4x128xf32, #tpu.memory_space<vmem>>, vector<1x1x16xf32>
    %131 = vector.shape_cast %130 : vector<1x1x16xf32> to vector<1x16xf32>
    %132 = vector.broadcast %131 : vector<1x16xf32> to vector<8x16xf32>
    %133 = arith.addf %129, %132 : vector<8x16xf32>
    %134 = math.absf %126 : vector<8x16xf32>
    %cst_93 = arith.constant 2.41421366 : f32
    %135 = vector.broadcast %cst_93 : f32 to vector<8x16xf32>
    %136 = arith.cmpf ogt, %134, %135 : vector<8x16xf32>
    %cst_94 = arith.constant 0.414213568 : f32
    %137 = vector.broadcast %cst_94 : f32 to vector<8x16xf32>
    %138 = arith.cmpf ogt, %134, %137 : vector<8x16xf32>
    %cst_95 = arith.constant dense<true> : vector<8x16xi1>
    %139 = arith.xori %136, %cst_95 : vector<8x16xi1>
    %140 = arith.andi %138, %139 : vector<8x16xi1>
    %cst_96 = arith.constant 1.000000e+00 : f32
    %141 = vector.broadcast %cst_96 : f32 to vector<8x16xf32>
    %142 = arith.addf %134, %141 : vector<8x16xf32>
    %143 = arith.select %136, %134, %142 : vector<8x16xi1>, vector<8x16xf32>
    %144 = tpu.reciprocal %143 {approx = true} : vector<8x16xf32> -> vector<8x16xf32>
    %145 = arith.mulf %143, %144 : vector<8x16xf32>
    %cst_97 = arith.constant 2.000000e+00 : f32
    %146 = vector.broadcast %cst_97 : f32 to vector<8x16xf32>
    %147 = arith.subf %146, %145 : vector<8x16xf32>
    %148 = arith.mulf %144, %147 : vector<8x16xf32>
    %cst_98 = arith.constant 0.000000e+00 : f32
    %149 = vector.broadcast %cst_98 : f32 to vector<8x16xf32>
    %150 = arith.subf %149, %148 : vector<8x16xf32>
    %cst_99 = arith.constant 1.000000e+00 : f32
    %151 = vector.broadcast %cst_99 : f32 to vector<8x16xf32>
    %152 = arith.subf %134, %151 : vector<8x16xf32>
    %153 = arith.mulf %152, %148 : vector<8x16xf32>
    %154 = arith.select %140, %153, %134 : vector<8x16xi1>, vector<8x16xf32>
    %155 = arith.select %136, %150, %154 : vector<8x16xi1>, vector<8x16xf32>
    %cst_100 = arith.constant 0.499513239 : f32
    %cst_101 = arith.constant 0.000000e+00 : f32
    %156 = vector.broadcast %cst_100 : f32 to vector<8x16xf32>
    %157 = vector.broadcast %cst_101 : f32 to vector<8x16xf32>
    %158 = arith.select %140, %156, %157 : vector<8x16xi1>, vector<8x16xf32>
    %cst_102 = arith.constant 0.999026477 : f32
    %159 = vector.broadcast %cst_102 : f32 to vector<8x16xf32>
    %160 = arith.select %136, %159, %158 : vector<8x16xi1>, vector<8x16xf32>
    %161 = arith.mulf %155, %155 : vector<8x16xf32>
    %cst_103 = arith.constant 0.051221814 : f32
    %162 = vector.broadcast %cst_103 : f32 to vector<8x16xf32>
    %163 = arith.mulf %162, %161 : vector<8x16xf32>
    %cst_104 = arith.constant -0.0882620811 : f32
    %164 = vector.broadcast %cst_104 : f32 to vector<8x16xf32>
    %165 = arith.addf %163, %164 : vector<8x16xf32>
    %166 = arith.mulf %165, %161 : vector<8x16xf32>
    %cst_105 = arith.constant 0.127058238 : f32
    %167 = vector.broadcast %cst_105 : f32 to vector<8x16xf32>
    %168 = arith.addf %166, %167 : vector<8x16xf32>
    %169 = arith.mulf %168, %161 : vector<8x16xf32>
    %cst_106 = arith.constant -0.211997554 : f32
    %170 = vector.broadcast %cst_106 : f32 to vector<8x16xf32>
    %171 = arith.addf %169, %170 : vector<8x16xf32>
    %172 = arith.mulf %171, %161 : vector<8x16xf32>
    %cst_107 = arith.constant 0.635999977 : f32
    %173 = vector.broadcast %cst_107 : f32 to vector<8x16xf32>
    %174 = arith.addf %172, %173 : vector<8x16xf32>
    %175 = arith.mulf %174, %155 : vector<8x16xf32>
    %176 = arith.addf %160, %175 : vector<8x16xf32>
    %cst_108 = arith.constant 0.000000e+00 : f32
    %177 = vector.broadcast %cst_108 : f32 to vector<8x16xf32>
    %178 = arith.cmpf olt, %126, %177 : vector<8x16xf32>
    %cst_109 = arith.constant 0.000000e+00 : f32
    %179 = vector.broadcast %cst_109 : f32 to vector<8x16xf32>
    %180 = arith.subf %179, %176 : vector<8x16xf32>
    %181 = arith.select %178, %180, %176 : vector<8x16xi1>, vector<8x16xf32>
    %182 = math.exp %181 : vector<8x16xf32>
    %183 = arith.mulf %182, %92 : vector<8x16xf32>
    %184 = arith.addf %183, %133 : vector<8x16xf32>
    %185 = arith.addf %93, %181 : vector<8x16xf32>
    %c2_110 = arith.constant 2 : index
    %c0_111 = arith.constant 0 : index
    %c0_112 = arith.constant 0 : index
    %186 = vector.load %arg1[%c2_110, %c0_111, %c0_112] : memref<4x16x128xf32, #tpu.memory_space<vmem>>, vector<1x16x128xf32>
    %187 = vector.shape_cast %186 : vector<1x16x128xf32> to vector<16x128xf32>
    %cst_113 = arith.constant dense<0.000000e+00> : vector<8x128xf32>
    %188 = tpu.matmul %184, %187, %cst_113 {dimension_numbers = #tpu.dot_dimension_numbers<[1], [0], [0], [1], [0, 0, 1, 1], [], []>} : vector<8x16xf32>, vector<16x128xf32>, vector<8x128xf32> -> vector<8x128xf32>
    %cst_114 = arith.constant 0.00999999977 : f32
    %189 = vector.broadcast %cst_114 : f32 to vector<8x128xf32>
    %190 = arith.mulf %189, %188 : vector<8x128xf32>
    %191 = arith.maximumf %188, %190 : vector<8x128xf32>
    %c2_115 = arith.constant 2 : index
    %c0_116 = arith.constant 0 : index
    %c0_117 = arith.constant 0 : index
    %c0_118 = arith.constant 0 : index
    %192 = vector.load %arg2[%c2_115, %c0_116, %c0_117, %c0_118] : memref<4x2x128x128xf32, #tpu.memory_space<vmem>>, vector<1x1x128x128xf32>
    %193 = vector.shape_cast %192 : vector<1x1x128x128xf32> to vector<128x128xf32>
    %cst_119 = arith.constant dense<0.000000e+00> : vector<8x128xf32>
    %194 = tpu.matmul %191, %193, %cst_119 {dimension_numbers = #tpu.dot_dimension_numbers<[1], [0], [0], [1], [0, 0, 1, 1], [], []>} : vector<8x128xf32>, vector<128x128xf32>, vector<8x128xf32> -> vector<8x128xf32>
    %c2_120 = arith.constant 2 : index
    %c0_121 = arith.constant 0 : index
    %c0_122 = arith.constant 0 : index
    %195 = vector.load %arg3[%c2_120, %c0_121, %c0_122] : memref<4x4x128xf32, #tpu.memory_space<vmem>>, vector<1x1x128xf32>
    %196 = vector.shape_cast %195 : vector<1x1x128xf32> to vector<1x128xf32>
    %197 = vector.broadcast %196 : vector<1x128xf32> to vector<8x128xf32>
    %198 = arith.addf %194, %197 : vector<8x128xf32>
    %cst_123 = arith.constant 0.00999999977 : f32
    %199 = vector.broadcast %cst_123 : f32 to vector<8x128xf32>
    %200 = arith.mulf %199, %198 : vector<8x128xf32>
    %201 = arith.maximumf %198, %200 : vector<8x128xf32>
    %c2_124 = arith.constant 2 : index
    %c1_125 = arith.constant 1 : index
    %c0_126 = arith.constant 0 : index
    %c0_127 = arith.constant 0 : index
    %202 = vector.load %arg2[%c2_124, %c1_125, %c0_126, %c0_127] : memref<4x2x128x128xf32, #tpu.memory_space<vmem>>, vector<1x1x128x128xf32>
    %203 = vector.shape_cast %202 : vector<1x1x128x128xf32> to vector<128x128xf32>
    %cst_128 = arith.constant dense<0.000000e+00> : vector<8x128xf32>
    %204 = tpu.matmul %201, %203, %cst_128 {dimension_numbers = #tpu.dot_dimension_numbers<[1], [0], [0], [1], [0, 0, 1, 1], [], []>} : vector<8x128xf32>, vector<128x128xf32>, vector<8x128xf32> -> vector<8x128xf32>
    %c2_129 = arith.constant 2 : index
    %c1_130 = arith.constant 1 : index
    %c0_131 = arith.constant 0 : index
    %205 = vector.load %arg3[%c2_129, %c1_130, %c0_131] : memref<4x4x128xf32, #tpu.memory_space<vmem>>, vector<1x1x128xf32>
    %206 = vector.shape_cast %205 : vector<1x1x128xf32> to vector<1x128xf32>
    %207 = vector.broadcast %206 : vector<1x128xf32> to vector<8x128xf32>
    %208 = arith.addf %204, %207 : vector<8x128xf32>
    %cst_132 = arith.constant 0.00999999977 : f32
    %209 = vector.broadcast %cst_132 : f32 to vector<8x128xf32>
    %210 = arith.mulf %209, %208 : vector<8x128xf32>
    %211 = arith.maximumf %208, %210 : vector<8x128xf32>
    %c2_133 = arith.constant 2 : index
    %c0_134 = arith.constant 0 : index
    %c0_135 = arith.constant 0 : index
    %c0_136 = arith.constant 0 : index
    %212 = vector.load %arg4[%c2_133, %c0_134, %c0_135, %c0_136] : memref<4x2x128x16xf32, #tpu.memory_space<vmem>>, vector<1x1x128x16xf32>
    %213 = vector.shape_cast %212 : vector<1x1x128x16xf32> to vector<128x16xf32>
    %cst_137 = arith.constant dense<0.000000e+00> : vector<8x16xf32>
    %214 = tpu.matmul %211, %213, %cst_137 {dimension_numbers = #tpu.dot_dimension_numbers<[1], [0], [0], [1], [0, 0, 1, 1], [], []>} : vector<8x128xf32>, vector<128x16xf32>, vector<8x16xf32> -> vector<8x16xf32>
    %c2_138 = arith.constant 2 : index
    %c2_139 = arith.constant 2 : index
    %c0_140 = arith.constant 0 : index
    %215 = vector.load %arg3[%c2_138, %c2_139, %c0_140] : memref<4x4x128xf32, #tpu.memory_space<vmem>>, vector<1x1x16xf32>
    %216 = vector.shape_cast %215 : vector<1x1x16xf32> to vector<1x16xf32>
    %217 = vector.broadcast %216 : vector<1x16xf32> to vector<8x16xf32>
    %218 = arith.addf %214, %217 : vector<8x16xf32>
    %c2_141 = arith.constant 2 : index
    %c1_142 = arith.constant 1 : index
    %c0_143 = arith.constant 0 : index
    %c0_144 = arith.constant 0 : index
    %219 = vector.load %arg4[%c2_141, %c1_142, %c0_143, %c0_144] : memref<4x2x128x16xf32, #tpu.memory_space<vmem>>, vector<1x1x128x16xf32>
    %220 = vector.shape_cast %219 : vector<1x1x128x16xf32> to vector<128x16xf32>
    %cst_145 = arith.constant dense<0.000000e+00> : vector<8x16xf32>
    %221 = tpu.matmul %211, %220, %cst_145 {dimension_numbers = #tpu.dot_dimension_numbers<[1], [0], [0], [1], [0, 0, 1, 1], [], []>} : vector<8x128xf32>, vector<128x16xf32>, vector<8x16xf32> -> vector<8x16xf32>
    %c2_146 = arith.constant 2 : index
    %c3_147 = arith.constant 3 : index
    %c0_148 = arith.constant 0 : index
    %222 = vector.load %arg3[%c2_146, %c3_147, %c0_148] : memref<4x4x128xf32, #tpu.memory_space<vmem>>, vector<1x1x16xf32>
    %223 = vector.shape_cast %222 : vector<1x1x16xf32> to vector<1x16xf32>
    %224 = vector.broadcast %223 : vector<1x16xf32> to vector<8x16xf32>
    %225 = arith.addf %221, %224 : vector<8x16xf32>
    %226 = math.absf %218 : vector<8x16xf32>
    %cst_149 = arith.constant 2.41421366 : f32
    %227 = vector.broadcast %cst_149 : f32 to vector<8x16xf32>
    %228 = arith.cmpf ogt, %226, %227 : vector<8x16xf32>
    %cst_150 = arith.constant 0.414213568 : f32
    %229 = vector.broadcast %cst_150 : f32 to vector<8x16xf32>
    %230 = arith.cmpf ogt, %226, %229 : vector<8x16xf32>
    %cst_151 = arith.constant dense<true> : vector<8x16xi1>
    %231 = arith.xori %228, %cst_151 : vector<8x16xi1>
    %232 = arith.andi %230, %231 : vector<8x16xi1>
    %cst_152 = arith.constant 1.000000e+00 : f32
    %233 = vector.broadcast %cst_152 : f32 to vector<8x16xf32>
    %234 = arith.addf %226, %233 : vector<8x16xf32>
    %235 = arith.select %228, %226, %234 : vector<8x16xi1>, vector<8x16xf32>
    %236 = tpu.reciprocal %235 {approx = true} : vector<8x16xf32> -> vector<8x16xf32>
    %237 = arith.mulf %235, %236 : vector<8x16xf32>
    %cst_153 = arith.constant 2.000000e+00 : f32
    %238 = vector.broadcast %cst_153 : f32 to vector<8x16xf32>
    %239 = arith.subf %238, %237 : vector<8x16xf32>
    %240 = arith.mulf %236, %239 : vector<8x16xf32>
    %cst_154 = arith.constant 0.000000e+00 : f32
    %241 = vector.broadcast %cst_154 : f32 to vector<8x16xf32>
    %242 = arith.subf %241, %240 : vector<8x16xf32>
    %cst_155 = arith.constant 1.000000e+00 : f32
    %243 = vector.broadcast %cst_155 : f32 to vector<8x16xf32>
    %244 = arith.subf %226, %243 : vector<8x16xf32>
    %245 = arith.mulf %244, %240 : vector<8x16xf32>
    %246 = arith.select %232, %245, %226 : vector<8x16xi1>, vector<8x16xf32>
    %247 = arith.select %228, %242, %246 : vector<8x16xi1>, vector<8x16xf32>
    %cst_156 = arith.constant 0.499513239 : f32
    %cst_157 = arith.constant 0.000000e+00 : f32
    %248 = vector.broadcast %cst_156 : f32 to vector<8x16xf32>
    %249 = vector.broadcast %cst_157 : f32 to vector<8x16xf32>
    %250 = arith.select %232, %248, %249 : vector<8x16xi1>, vector<8x16xf32>
    %cst_158 = arith.constant 0.999026477 : f32
    %251 = vector.broadcast %cst_158 : f32 to vector<8x16xf32>
    %252 = arith.select %228, %251, %250 : vector<8x16xi1>, vector<8x16xf32>
    %253 = arith.mulf %247, %247 : vector<8x16xf32>
    %cst_159 = arith.constant 0.051221814 : f32
    %254 = vector.broadcast %cst_159 : f32 to vector<8x16xf32>
    %255 = arith.mulf %254, %253 : vector<8x16xf32>
    %cst_160 = arith.constant -0.0882620811 : f32
    %256 = vector.broadcast %cst_160 : f32 to vector<8x16xf32>
    %257 = arith.addf %255, %256 : vector<8x16xf32>
    %258 = arith.mulf %257, %253 : vector<8x16xf32>
    %cst_161 = arith.constant 0.127058238 : f32
    %259 = vector.broadcast %cst_161 : f32 to vector<8x16xf32>
    %260 = arith.addf %258, %259 : vector<8x16xf32>
    %261 = arith.mulf %260, %253 : vector<8x16xf32>
    %cst_162 = arith.constant -0.211997554 : f32
    %262 = vector.broadcast %cst_162 : f32 to vector<8x16xf32>
    %263 = arith.addf %261, %262 : vector<8x16xf32>
    %264 = arith.mulf %263, %253 : vector<8x16xf32>
    %cst_163 = arith.constant 0.635999977 : f32
    %265 = vector.broadcast %cst_163 : f32 to vector<8x16xf32>
    %266 = arith.addf %264, %265 : vector<8x16xf32>
    %267 = arith.mulf %266, %247 : vector<8x16xf32>
    %268 = arith.addf %252, %267 : vector<8x16xf32>
    %cst_164 = arith.constant 0.000000e+00 : f32
    %269 = vector.broadcast %cst_164 : f32 to vector<8x16xf32>
    %270 = arith.cmpf olt, %218, %269 : vector<8x16xf32>
    %cst_165 = arith.constant 0.000000e+00 : f32
    %271 = vector.broadcast %cst_165 : f32 to vector<8x16xf32>
    %272 = arith.subf %271, %268 : vector<8x16xf32>
    %273 = arith.select %270, %272, %268 : vector<8x16xi1>, vector<8x16xf32>
    %274 = math.exp %273 : vector<8x16xf32>
    %275 = arith.mulf %274, %184 : vector<8x16xf32>
    %276 = arith.addf %275, %225 : vector<8x16xf32>
    %277 = arith.addf %185, %273 : vector<8x16xf32>
    %c3_166 = arith.constant 3 : index
    %c0_167 = arith.constant 0 : index
    %c0_168 = arith.constant 0 : index
    %278 = vector.load %arg1[%c3_166, %c0_167, %c0_168] : memref<4x16x128xf32, #tpu.memory_space<vmem>>, vector<1x16x128xf32>
    %279 = vector.shape_cast %278 : vector<1x16x128xf32> to vector<16x128xf32>
    %cst_169 = arith.constant dense<0.000000e+00> : vector<8x128xf32>
    %280 = tpu.matmul %276, %279, %cst_169 {dimension_numbers = #tpu.dot_dimension_numbers<[1], [0], [0], [1], [0, 0, 1, 1], [], []>} : vector<8x16xf32>, vector<16x128xf32>, vector<8x128xf32> -> vector<8x128xf32>
    %cst_170 = arith.constant 0.00999999977 : f32
    %281 = vector.broadcast %cst_170 : f32 to vector<8x128xf32>
    %282 = arith.mulf %281, %280 : vector<8x128xf32>
    %283 = arith.maximumf %280, %282 : vector<8x128xf32>
    %c3_171 = arith.constant 3 : index
    %c0_172 = arith.constant 0 : index
    %c0_173 = arith.constant 0 : index
    %c0_174 = arith.constant 0 : index
    %284 = vector.load %arg2[%c3_171, %c0_172, %c0_173, %c0_174] : memref<4x2x128x128xf32, #tpu.memory_space<vmem>>, vector<1x1x128x128xf32>
    %285 = vector.shape_cast %284 : vector<1x1x128x128xf32> to vector<128x128xf32>
    %cst_175 = arith.constant dense<0.000000e+00> : vector<8x128xf32>
    %286 = tpu.matmul %283, %285, %cst_175 {dimension_numbers = #tpu.dot_dimension_numbers<[1], [0], [0], [1], [0, 0, 1, 1], [], []>} : vector<8x128xf32>, vector<128x128xf32>, vector<8x128xf32> -> vector<8x128xf32>
    %c3_176 = arith.constant 3 : index
    %c0_177 = arith.constant 0 : index
    %c0_178 = arith.constant 0 : index
    %287 = vector.load %arg3[%c3_176, %c0_177, %c0_178] : memref<4x4x128xf32, #tpu.memory_space<vmem>>, vector<1x1x128xf32>
    %288 = vector.shape_cast %287 : vector<1x1x128xf32> to vector<1x128xf32>
    %289 = vector.broadcast %288 : vector<1x128xf32> to vector<8x128xf32>
    %290 = arith.addf %286, %289 : vector<8x128xf32>
    %cst_179 = arith.constant 0.00999999977 : f32
    %291 = vector.broadcast %cst_179 : f32 to vector<8x128xf32>
    %292 = arith.mulf %291, %290 : vector<8x128xf32>
    %293 = arith.maximumf %290, %292 : vector<8x128xf32>
    %c3_180 = arith.constant 3 : index
    %c1_181 = arith.constant 1 : index
    %c0_182 = arith.constant 0 : index
    %c0_183 = arith.constant 0 : index
    %294 = vector.load %arg2[%c3_180, %c1_181, %c0_182, %c0_183] : memref<4x2x128x128xf32, #tpu.memory_space<vmem>>, vector<1x1x128x128xf32>
    %295 = vector.shape_cast %294 : vector<1x1x128x128xf32> to vector<128x128xf32>
    %cst_184 = arith.constant dense<0.000000e+00> : vector<8x128xf32>
    %296 = tpu.matmul %293, %295, %cst_184 {dimension_numbers = #tpu.dot_dimension_numbers<[1], [0], [0], [1], [0, 0, 1, 1], [], []>} : vector<8x128xf32>, vector<128x128xf32>, vector<8x128xf32> -> vector<8x128xf32>
    %c3_185 = arith.constant 3 : index
    %c1_186 = arith.constant 1 : index
    %c0_187 = arith.constant 0 : index
    %297 = vector.load %arg3[%c3_185, %c1_186, %c0_187] : memref<4x4x128xf32, #tpu.memory_space<vmem>>, vector<1x1x128xf32>
    %298 = vector.shape_cast %297 : vector<1x1x128xf32> to vector<1x128xf32>
    %299 = vector.broadcast %298 : vector<1x128xf32> to vector<8x128xf32>
    %300 = arith.addf %296, %299 : vector<8x128xf32>
    %cst_188 = arith.constant 0.00999999977 : f32
    %301 = vector.broadcast %cst_188 : f32 to vector<8x128xf32>
    %302 = arith.mulf %301, %300 : vector<8x128xf32>
    %303 = arith.maximumf %300, %302 : vector<8x128xf32>
    %c3_189 = arith.constant 3 : index
    %c0_190 = arith.constant 0 : index
    %c0_191 = arith.constant 0 : index
    %c0_192 = arith.constant 0 : index
    %304 = vector.load %arg4[%c3_189, %c0_190, %c0_191, %c0_192] : memref<4x2x128x16xf32, #tpu.memory_space<vmem>>, vector<1x1x128x16xf32>
    %305 = vector.shape_cast %304 : vector<1x1x128x16xf32> to vector<128x16xf32>
    %cst_193 = arith.constant dense<0.000000e+00> : vector<8x16xf32>
    %306 = tpu.matmul %303, %305, %cst_193 {dimension_numbers = #tpu.dot_dimension_numbers<[1], [0], [0], [1], [0, 0, 1, 1], [], []>} : vector<8x128xf32>, vector<128x16xf32>, vector<8x16xf32> -> vector<8x16xf32>
    %c3_194 = arith.constant 3 : index
    %c2_195 = arith.constant 2 : index
    %c0_196 = arith.constant 0 : index
    %307 = vector.load %arg3[%c3_194, %c2_195, %c0_196] : memref<4x4x128xf32, #tpu.memory_space<vmem>>, vector<1x1x16xf32>
    %308 = vector.shape_cast %307 : vector<1x1x16xf32> to vector<1x16xf32>
    %309 = vector.broadcast %308 : vector<1x16xf32> to vector<8x16xf32>
    %310 = arith.addf %306, %309 : vector<8x16xf32>
    %c3_197 = arith.constant 3 : index
    %c1_198 = arith.constant 1 : index
    %c0_199 = arith.constant 0 : index
    %c0_200 = arith.constant 0 : index
    %311 = vector.load %arg4[%c3_197, %c1_198, %c0_199, %c0_200] : memref<4x2x128x16xf32, #tpu.memory_space<vmem>>, vector<1x1x128x16xf32>
    %312 = vector.shape_cast %311 : vector<1x1x128x16xf32> to vector<128x16xf32>
    %cst_201 = arith.constant dense<0.000000e+00> : vector<8x16xf32>
    %313 = tpu.matmul %303, %312, %cst_201 {dimension_numbers = #tpu.dot_dimension_numbers<[1], [0], [0], [1], [0, 0, 1, 1], [], []>} : vector<8x128xf32>, vector<128x16xf32>, vector<8x16xf32> -> vector<8x16xf32>
    %c3_202 = arith.constant 3 : index
    %c3_203 = arith.constant 3 : index
    %c0_204 = arith.constant 0 : index
    %314 = vector.load %arg3[%c3_202, %c3_203, %c0_204] : memref<4x4x128xf32, #tpu.memory_space<vmem>>, vector<1x1x16xf32>
    %315 = vector.shape_cast %314 : vector<1x1x16xf32> to vector<1x16xf32>
    %316 = vector.broadcast %315 : vector<1x16xf32> to vector<8x16xf32>
    %317 = arith.addf %313, %316 : vector<8x16xf32>
    %318 = math.absf %310 : vector<8x16xf32>
    %cst_205 = arith.constant 2.41421366 : f32
    %319 = vector.broadcast %cst_205 : f32 to vector<8x16xf32>
    %320 = arith.cmpf ogt, %318, %319 : vector<8x16xf32>
    %cst_206 = arith.constant 0.414213568 : f32
    %321 = vector.broadcast %cst_206 : f32 to vector<8x16xf32>
    %322 = arith.cmpf ogt, %318, %321 : vector<8x16xf32>
    %cst_207 = arith.constant dense<true> : vector<8x16xi1>
    %323 = arith.xori %320, %cst_207 : vector<8x16xi1>
    %324 = arith.andi %322, %323 : vector<8x16xi1>
    %cst_208 = arith.constant 1.000000e+00 : f32
    %325 = vector.broadcast %cst_208 : f32 to vector<8x16xf32>
    %326 = arith.addf %318, %325 : vector<8x16xf32>
    %327 = arith.select %320, %318, %326 : vector<8x16xi1>, vector<8x16xf32>
    %328 = tpu.reciprocal %327 {approx = true} : vector<8x16xf32> -> vector<8x16xf32>
    %329 = arith.mulf %327, %328 : vector<8x16xf32>
    %cst_209 = arith.constant 2.000000e+00 : f32
    %330 = vector.broadcast %cst_209 : f32 to vector<8x16xf32>
    %331 = arith.subf %330, %329 : vector<8x16xf32>
    %332 = arith.mulf %328, %331 : vector<8x16xf32>
    %cst_210 = arith.constant 0.000000e+00 : f32
    %333 = vector.broadcast %cst_210 : f32 to vector<8x16xf32>
    %334 = arith.subf %333, %332 : vector<8x16xf32>
    %cst_211 = arith.constant 1.000000e+00 : f32
    %335 = vector.broadcast %cst_211 : f32 to vector<8x16xf32>
    %336 = arith.subf %318, %335 : vector<8x16xf32>
    %337 = arith.mulf %336, %332 : vector<8x16xf32>
    %338 = arith.select %324, %337, %318 : vector<8x16xi1>, vector<8x16xf32>
    %339 = arith.select %320, %334, %338 : vector<8x16xi1>, vector<8x16xf32>
    %cst_212 = arith.constant 0.499513239 : f32
    %cst_213 = arith.constant 0.000000e+00 : f32
    %340 = vector.broadcast %cst_212 : f32 to vector<8x16xf32>
    %341 = vector.broadcast %cst_213 : f32 to vector<8x16xf32>
    %342 = arith.select %324, %340, %341 : vector<8x16xi1>, vector<8x16xf32>
    %cst_214 = arith.constant 0.999026477 : f32
    %343 = vector.broadcast %cst_214 : f32 to vector<8x16xf32>
    %344 = arith.select %320, %343, %342 : vector<8x16xi1>, vector<8x16xf32>
    %345 = arith.mulf %339, %339 : vector<8x16xf32>
    %cst_215 = arith.constant 0.051221814 : f32
    %346 = vector.broadcast %cst_215 : f32 to vector<8x16xf32>
    %347 = arith.mulf %346, %345 : vector<8x16xf32>
    %cst_216 = arith.constant -0.0882620811 : f32
    %348 = vector.broadcast %cst_216 : f32 to vector<8x16xf32>
    %349 = arith.addf %347, %348 : vector<8x16xf32>
    %350 = arith.mulf %349, %345 : vector<8x16xf32>
    %cst_217 = arith.constant 0.127058238 : f32
    %351 = vector.broadcast %cst_217 : f32 to vector<8x16xf32>
    %352 = arith.addf %350, %351 : vector<8x16xf32>
    %353 = arith.mulf %352, %345 : vector<8x16xf32>
    %cst_218 = arith.constant -0.211997554 : f32
    %354 = vector.broadcast %cst_218 : f32 to vector<8x16xf32>
    %355 = arith.addf %353, %354 : vector<8x16xf32>
    %356 = arith.mulf %355, %345 : vector<8x16xf32>
    %cst_219 = arith.constant 0.635999977 : f32
    %357 = vector.broadcast %cst_219 : f32 to vector<8x16xf32>
    %358 = arith.addf %356, %357 : vector<8x16xf32>
    %359 = arith.mulf %358, %339 : vector<8x16xf32>
    %360 = arith.addf %344, %359 : vector<8x16xf32>
    %cst_220 = arith.constant 0.000000e+00 : f32
    %361 = vector.broadcast %cst_220 : f32 to vector<8x16xf32>
    %362 = arith.cmpf olt, %310, %361 : vector<8x16xf32>
    %cst_221 = arith.constant 0.000000e+00 : f32
    %363 = vector.broadcast %cst_221 : f32 to vector<8x16xf32>
    %364 = arith.subf %363, %360 : vector<8x16xf32>
    %365 = arith.select %362, %364, %360 : vector<8x16xi1>, vector<8x16xf32>
    %366 = math.exp %365 : vector<8x16xf32>
    %367 = arith.mulf %366, %276 : vector<8x16xf32>
    %368 = arith.addf %367, %317 : vector<8x16xf32>
    %369 = arith.addf %277, %365 : vector<8x16xf32>
    %cst_222 = arith.constant dense<0.000000e+00> : vector<8xf32>
    %370 = vector.multi_reduction <add>, %369, %cst_222 [1] : vector<8x16xf32> to vector<8xf32>
    %371 = vector.shape_cast %370 : vector<8xf32> to vector<8x1xf32>
    %372 = tpu.iota {dimensions = array<i32: 1>} : vector<8x16xi32>
    %c8_i32 = arith.constant 8 : i32
    %373 = vector.broadcast %c8_i32 : i32 to vector<8x16xi32>
    %374 = arith.cmpi slt, %372, %373 : vector<8x16xi32>
    %cst_223 = arith.constant 0.000000e+00 : f32
    %375 = vector.broadcast %cst_223 : f32 to vector<8x16xf32>
    %376 = arith.select %374, %368, %375 : vector<8x16xi1>, vector<8x16xf32>
    %c8_i32_224 = arith.constant 8 : i32
    %377 = vector.broadcast %c8_i32_224 : i32 to vector<8x16xi32>
    %378 = arith.cmpi eq, %372, %377 : vector<8x16xi32>
    %cst_225 = arith.constant 0.000000e+00 : f32
    %379 = vector.shape_cast %371 : vector<8x1xf32> to vector<8x1xf32>
    %380 = vector.broadcast %379 : vector<8x1xf32> to vector<8x16xf32>
    %381 = vector.broadcast %cst_225 : f32 to vector<8x16xf32>
    %382 = arith.select %378, %380, %381 : vector<8x16xi1>, vector<8x16xf32>
    %383 = arith.addf %376, %382 : vector<8x16xf32>
    %c0_226 = arith.constant 0 : index
    %c0_227 = arith.constant 0 : index
    %384 = vector.load %arg5[%c0_226, %c0_227] : memref<8x16xf32, #tpu.memory_space<vmem>>, vector<8x16xf32>
    tpu.vector_store %arg5[%c0_226, %c0_227], %383 {strides = array<i32>} : memref<8x16xf32, #tpu.memory_space<vmem>>, vector<8x16xf32>,
    return
  }
}

</mosaic_0001>

<llo_original>
// kernel: cinn_forward.1
$region0: #{cinn_forward.1}
  #allocation0 [shape = 'u32[]', space=smem, size = 0x4, offset = 0x4, fixed_abs, tag = 'smem constant byte address 0x4 - core index']
  #allocation1 [shape = 'u32[144,128]{1,0:T(1,128)}', space=vmem, size = 0x12000, scoped, tag = 'internal scratch']
  %s0 = inlined_call_operand.vmem [shape: f32[8,16], index: 0, kind: input, shape index: {}]
  %s1 = inlined_call_operand.vmem [shape: f32[4,16,128], index: 1, kind: input, shape index: {}]
  %s2 = inlined_call_operand.vmem [shape: f32[4,2,128,128], index: 2, kind: input, shape index: {}]
  %s3 = inlined_call_operand.vmem [shape: f32[4,4,128], index: 3, kind: input, shape index: {}]
  %s4 = inlined_call_operand.vmem [shape: f32[4,2,128,16], index: 4, kind: input, shape index: {}]
  %s5 = inlined_call_operand.vmem [shape: f32[8,16], index: 5, kind: output, shape index: {}]
  %s6 = sld [smem:[#allocation0]]
  $region30: #{cinn_forward.1} parent=0
    _
  %s8 = ssub.s32 1, %s6
  %s9 = scalar_select 0, %s8, %s6
  // Predicated region
  $region2: #{cinn_forward.1} parent=0 // pred_check
    _
  $region3: #{cinn_forward.1} parent=0 // pred_check_branch
    %11 = sbr.rel (0) target = $region5
  $region4: #{cinn_forward.1} parent=0 // pred_region
    _
  $region5: #{cinn_forward.1} parent=0 // pred_fallthru
    _
  // Predicated region
  $region6: #{cinn_forward.1} parent=0 // pred_check
    _
  $region7: #{cinn_forward.1} parent=0 // pred_check_branch
    %13 = sbr.rel (0) target = $region9
  $region8: #{cinn_forward.1} parent=0 // pred_region
    _
  $region9: #{cinn_forward.1} parent=0 // pred_fallthru
    _
  // Predicated region
  $region10: #{cinn_forward.1} parent=0 // pred_check
    _
  $region11: #{cinn_forward.1} parent=0 // pred_check_branch
    %15 = sbr.rel (0) target = $region13
  $region12: #{cinn_forward.1} parent=0 // pred_region
    _
  $region13: #{cinn_forward.1} parent=0 // pred_fallthru
    _
  // Predicated region
  $region14: #{cinn_forward.1} parent=0 // pred_check
    _
  $region15: #{cinn_forward.1} parent=0 // pred_check_branch
    %17 = sbr.rel (0) target = $region17
  $region16: #{cinn_forward.1} parent=0 // pred_region
    _
  $region17: #{cinn_forward.1} parent=0 // pred_fallthru
    _
  // Predicated region
  $region18: #{cinn_forward.1} parent=0 // pred_check
    _
  $region19: #{cinn_forward.1} parent=0 // pred_check_branch
    %19 = sbr.rel (0) target = $region21
  $region20: #{cinn_forward.1} parent=0 // pred_region
    _
  $region21: #{cinn_forward.1} parent=0 // pred_fallthru
    _
  %v20 = vld [vmem:[%s0] sm:$0xff]
  %v21 = vld [vmem:[%s1] sm:$0xff]
  %v22 = vld [vmem:[%s1 + $0x8] sm:$0xff]
  %vm23 = vcmask 130048
  %v25 = vsel %vm23, %v20, 0
  %27 = vmatprep.subr.mxu0 0.0
  %28 = vmatpush1.msra.mxu0 %v21
  %29 = vmatprep.subr.mxu0 0.0
  %30 = vmatpush1.msra.mxu0 %v22
  %31 = vmatprep.subr.mxu0 0.0
  %32 = vmatpush1.msra.mxu0 0.0
  %33 = vmatprep.subr.mxu0 0.0
  %34 = vmatpush1.msra.mxu0 0.0
  %35 = vmatprep.subr.mxu0 0.0
  %36 = vmatpush1.msra.mxu0 0.0
  %37 = vmatprep.subr.mxu0 0.0
  %38 = vmatpush1.msra.mxu0 0.0
  %39 = vmatprep.subr.mxu0 0.0
  %40 = vmatpush1.msra.mxu0 0.0
  %41 = vmatprep.subr.mxu0 0.0
  %42 = vmatpush1.msra.mxu0 0.0
  %43 = vmatprep.subr.mxu0 0.0
  %44 = vmatpush1.msra.mxu0 0.0
  %45 = vmatprep.subr.mxu0 0.0
  %46 = vmatpush1.msra.mxu0 0.0
  %47 = vmatprep.subr.mxu0 0.0
  %48 = vmatpush1.msra.mxu0 0.0
  %49 = vmatprep.subr.mxu0 0.0
  %50 = vmatpush1.msra.mxu0 0.0
  %51 = vmatprep.subr.mxu0 0.0
  %52 = vmatpush1.msra.mxu0 0.0
  %53 = vmatprep.subr.mxu0 0.0
  %54 = vmatpush1.msra.mxu0 0.0
  %55 = vmatprep.subr.mxu0 0.0
  %56 = vmatpush1.msra.mxu0 0.0
  %57 = vmatprep.subr.mxu0 0.0
  %58 = vmatpush1.msra.mxu0 0.0
  %59 = vmatprep.subr.mxu0 0.0
  %60 = vmatpush1.msra.mxu0 0.0
  %61 = vmatprep.subr.mxu0 0.0
  %62 = vmatpush1.msra.mxu0 0.0
  %63 = vmatprep.subr.mxu0 0.0
  %64 = vmatpush1.msra.mxu0 0.0
  %65 = vmatprep.subr.mxu0 0.0
  %66 = vmatpush1.msra.mxu0 0.0
  %67 = vmatprep.subr.mxu0 0.0
  %68 = vmatpush1.msra.mxu0 0.0
  %69 = vmatprep.subr.mxu0 0.0
  %70 = vmatpush1.msra.mxu0 0.0
  %71 = vmatprep.subr.mxu0 0.0
  %72 = vmatpush1.msra.mxu0 0.0
  %73 = vmatprep.subr.mxu0 0.0
  %74 = vmatpush1.msra.mxu0 0.0
  %75 = vmatprep.subr.mxu0 0.0
  %76 = vmatpush1.msra.mxu0 0.0
  %77 = vmatprep.subr.mxu0 0.0
  %78 = vmatpush1.msra.mxu0 0.0
  %79 = vmatprep.subr.mxu0 0.0
  %80 = vmatpush1.msra.mxu0 0.0
  %81 = vmatprep.subr.mxu0 0.0
  %82 = vmatpush1.msra.mxu0 0.0
  %83 = vmatprep.subr.mxu0 0.0
  %84 = vmatpush1.msra.mxu0 0.0
  %85 = vmatprep.subr.mxu0 0.0
  %86 = vmatpush1.msra.mxu0 0.0
  %87 = vmatprep.subr.mxu0 0.0
  %88 = vmatpush1.msra.mxu0 0.0
  %89 = vmatprep.subr.mxu0 0.0
  %90 = vmatpush1.msra.mxu0 0.0
  %91 = vmatprep.mubr.f32.mxu0 0.0
  %92 = vmatmul.mubr.f32.gmra.mrb[0].mxu0 %v25
  %v93 = vpop.f32.mrb[0].mxu0
  %v94 = vadd.f32 0.0, %v93
  %v95 = vpop.f32.mrb[0].mxu0
  %96 = vdwg.mxu0
  %v97 = vmul.f32 %v94, 0.01
  %v98 = vmax.f32 %v94, %v97
  %v99 = vld [vmem:[%s2] sm:$0xff]
  %v100 = vld [vmem:[%s2 + $0x8] sm:$0xff]
  %v101 = vld [vmem:[%s2 + $0x10] sm:$0xff]
  %v102 = vld [vmem:[%s2 + $0x18] sm:$0xff]
  %v103 = vld [vmem:[%s2 + $0x20] sm:$0xff]
  %v104 = vld [vmem:[%s2 + $0x28] sm:$0xff]
  %v105 = vld [vmem:[%s2 + $0x30] sm:$0xff]
  %v106 = vld [vmem:[%s2 + $0x38] sm:$0xff]
  %v107 = vld [vmem:[%s2 + $0x40] sm:$0xff]
  %v108 = vld [vmem:[%s2 + $0x48] sm:$0xff]
  %v109 = vld [vmem:[%s2 + $0x50] sm:$0xff]
  %v110 = vld [vmem:[%s2 + $0x58] sm:$0xff]
  %v111 = vld [vmem:[%s2 + $0x60] sm:$0xff]
  %v112 = vld [vmem:[%s2 + $0x68] sm:$0xff]
  %v113 = vld [vmem:[%s2 + $0x70] sm:$0xff]
  %v114 = vld [vmem:[%s2 + $0x78] sm:$0xff]
  %v115 = vld [vmem:[%s3] sm:$0x1]
  %v116 = vlaneseq
  %v117 = vshrl.u32 %v116, 7
  %v118 = vsub.s32 0, %v117
  %v119 = vrot.slane %v115, %v118
  %120 = vmatprep.subr.mxu0 0.0
  %121 = vmatpush1.msra.mxu0 %v99
  %122 = vmatprep.subr.mxu0 0.0
  %123 = vmatpush1.msra.mxu0 %v100
  %124 = vmatprep.subr.mxu0 0.0
  %125 = vmatpush1.msra.mxu0 %v101
  %126 = vmatprep.subr.mxu0 0.0
  %127 = vmatpush1.msra.mxu0 %v102
  %128 = vmatprep.subr.mxu0 0.0
  %129 = vmatpush1.msra.mxu0 %v103
  %130 = vmatprep.subr.mxu0 0.0
  %131 = vmatpush1.msra.mxu0 %v104
  %132 = vmatprep.subr.mxu0 0.0
  %133 = vmatpush1.msra.mxu0 %v105
  %134 = vmatprep.subr.mxu0 0.0
  %135 = vmatpush1.msra.mxu0 %v106
  %136 = vmatprep.subr.mxu0 0.0
  %137 = vmatpush1.msra.mxu0 %v107
  %138 = vmatprep.subr.mxu0 0.0
  %139 = vmatpush1.msra.mxu0 %v108
  %140 = vmatprep.subr.mxu0 0.0
  %141 = vmatpush1.msra.mxu0 %v109
  %142 = vmatprep.subr.mxu0 0.0
  %143 = vmatpush1.msra.mxu0 %v110
  %144 = vmatprep.subr.mxu0 0.0
  %145 = vmatpush1.msra.mxu0 %v111
  %146 = vmatprep.subr.mxu0 0.0
  %147 = vmatpush1.msra.mxu0 %v112
  %148 = vmatprep.subr.mxu0 0.0
  %149 = vmatpush1.msra.mxu0 %v113
  %150 = vmatprep.subr.mxu0 0.0
  %151 = vmatpush1.msra.mxu0 %v114
  %152 = vmatprep.subr.mxu0 0.0
  %153 = vmatpush1.msra.mxu0 0.0
  %154 = vmatprep.subr.mxu0 0.0
  %155 = vmatpush1.msra.mxu0 0.0
  %156 = vmatprep.subr.mxu0 0.0
  %157 = vmatpush1.msra.mxu0 0.0
  %158 = vmatprep.subr.mxu0 0.0
  %159 = vmatpush1.msra.mxu0 0.0
  %160 = vmatprep.subr.mxu0 0.0
  %161 = vmatpush1.msra.mxu0 0.0
  %162 = vmatprep.subr.mxu0 0.0
  %163 = vmatpush1.msra.mxu0 0.0
  %164 = vmatprep.subr.mxu0 0.0
  %165 = vmatpush1.msra.mxu0 0.0
  %166 = vmatprep.subr.mxu0 0.0
  %167 = vmatpush1.msra.mxu0 0.0
  %168 = vmatprep.subr.mxu0 0.0
  %169 = vmatpush1.msra.mxu0 0.0
  %170 = vmatprep.subr.mxu0 0.0
  %171 = vmatpush1.msra.mxu0 0.0
  %172 = vmatprep.subr.mxu0 0.0
  %173 = vmatpush1.msra.mxu0 0.0
  %174 = vmatprep.subr.mxu0 0.0
  %175 = vmatpush1.msra.mxu0 0.0
  %176 = vmatprep.subr.mxu0 0.0
  %177 = vmatpush1.msra.mxu0 0.0
  %178 = vmatprep.subr.mxu0 0.0
  %179 = vmatpush1.msra.mxu0 0.0
  %180 = vmatprep.subr.mxu0 0.0
  %181 = vmatpush1.msra.mxu0 0.0
  %182 = vmatprep.subr.mxu0 0.0
  %183 = vmatpush1.msra.mxu0 0.0
  %184 = vmatprep.mubr.f32.mxu0 0.0
  %185 = vmatmul.mubr.f32.gmra.mrb[0].mxu0 %v98
  %v186 = vpop.f32.mrb[0].mxu0
  %v187 = vadd.f32 %v119, %v186
  %v188 = vpop.f32.mrb[0].mxu0
  %189 = vdwg.mxu0
  %v190 = vmul.f32 %v187, 0.01
  %v191 = vmax.f32 %v187, %v190
  %s192 = scalar_lea.vmem %s2, 128
  %v193 = vld [vmem:[%s192] sm:$0xff]
  %v194 = vld [vmem:[%s192 + $0x8] sm:$0xff]
  %v195 = vld [vmem:[%s192 + $0x10] sm:$0xff]
  %v196 = vld [vmem:[%s192 + $0x18] sm:$0xff]
  %v197 = vld [vmem:[%s192 + $0x20] sm:$0xff]
  %v198 = vld [vmem:[%s192 + $0x28] sm:$0xff]
  %v199 = vld [vmem:[%s192 + $0x30] sm:$0xff]
  %v200 = vld [vmem:[%s192 + $0x38] sm:$0xff]
  %v201 = vld [vmem:[%s192 + $0x40] sm:$0xff]
  %v202 = vld [vmem:[%s192 + $0x48] sm:$0xff]
  %v203 = vld [vmem:[%s192 + $0x50] sm:$0xff]
  %v204 = vld [vmem:[%s192 + $0x58] sm:$0xff]
  %v205 = vld [vmem:[%s192 + $0x60] sm:$0xff]
  %v206 = vld [vmem:[%s192 + $0x68] sm:$0xff]
  %v207 = vld [vmem:[%s192 + $0x70] sm:$0xff]
  %v208 = vld [vmem:[%s192 + $0x78] sm:$0xff]
  %v209 = vld [vmem:[%s3 + $0x1] sm:$0x1]
  %v210 = vlaneseq
  %v211 = vshrl.u32 %v210, 7
  %v212 = vsub.s32 0, %v211
  %v213 = vrot.slane %v209, %v212
  %214 = vmatprep.subr.mxu0 0.0
  %215 = vmatpush1.msra.mxu0 %v193
  %216 = vmatprep.subr.mxu0 0.0
  %217 = vmatpush1.msra.mxu0 %v194
  %218 = vmatprep.subr.mxu0 0.0
  %219 = vmatpush1.msra.mxu0 %v195
  %220 = vmatprep.subr.mxu0 0.0
  %221 = vmatpush1.msra.mxu0 %v196
  %222 = vmatprep.subr.mxu0 0.0
  %223 = vmatpush1.msra.mxu0 %v197
  %224 = vmatprep.subr.mxu0 0.0
  %225 = vmatpush1.msra.mxu0 %v198
  %226 = vmatprep.subr.mxu0 0.0
  %227 = vmatpush1.msra.mxu0 %v199
  %228 = vmatprep.subr.mxu0 0.0
  %229 = vmatpush1.msra.mxu0 %v200
  %230 = vmatprep.subr.mxu0 0.0
  %231 = vmatpush1.msra.mxu0 %v201
  %232 = vmatprep.subr.mxu0 0.0
  %233 = vmatpush1.msra.mxu0 %v202
  %234 = vmatprep.subr.mxu0 0.0
  %235 = vmatpush1.msra.mxu0 %v203
  %236 = vmatprep.subr.mxu0 0.0
  %237 = vmatpush1.msra.mxu0 %v204
  %238 = vmatprep.subr.mxu0 0.0
  %239 = vmatpush1.msra.mxu0 %v205
  %240 = vmatprep.subr.mxu0 0.0
  %241 = vmatpush1.msra.mxu0 %v206
  %242 = vmatprep.subr.mxu0 0.0
  %243 = vmatpush1.msra.mxu0 %v207
  %244 = vmatprep.subr.mxu0 0.0
  %245 = vmatpush1.msra.mxu0 %v208
  %246 = vmatprep.subr.mxu0 0.0
  %247 = vmatpush1.msra.mxu0 0.0
  %248 = vmatprep.subr.mxu0 0.0
  %249 = vmatpush1.msra.mxu0 0.0
  %250 = vmatprep.subr.mxu0 0.0
  %251 = vmatpush1.msra.mxu0 0.0
  %252 = vmatprep.subr.mxu0 0.0
  %253 = vmatpush1.msra.mxu0 0.0
  %254 = vmatprep.subr.mxu0 0.0
  %255 = vmatpush1.msra.mxu0 0.0
  %256 = vmatprep.subr.mxu0 0.0
  %257 = vmatpush1.msra.mxu0 0.0
  %258 = vmatprep.subr.mxu0 0.0
  %259 = vmatpush1.msra.mxu0 0.0
  %260 = vmatprep.subr.mxu0 0.0
  %261 = vmatpush1.msra.mxu0 0.0
  %262 = vmatprep.subr.mxu0 0.0
  %263 = vmatpush1.msra.mxu0 0.0
  %264 = vmatprep.subr.mxu0 0.0
  %265 = vmatpush1.msra.mxu0 0.0
  %266 = vmatprep.subr.mxu0 0.0
  %267 = vmatpush1.msra.mxu0 0.0
  %268 = vmatprep.subr.mxu0 0.0
  %269 = vmatpush1.msra.mxu0 0.0
  %270 = vmatprep.subr.mxu0 0.0
  %271 = vmatpush1.msra.mxu0 0.0
  %272 = vmatprep.subr.mxu0 0.0
  %273 = vmatpush1.msra.mxu0 0.0
  %274 = vmatprep.subr.mxu0 0.0
  %275 = vmatpush1.msra.mxu0 0.0
  %276 = vmatprep.subr.mxu0 0.0
  %277 = vmatpush1.msra.mxu0 0.0
  %278 = vmatprep.mubr.f32.mxu0 0.0
  %279 = vmatmul.mubr.f32.gmra.mrb[0].mxu0 %v191
  %v280 = vpop.f32.mrb[0].mxu0
  %v281 = vadd.f32 %v213, %v280
  %v282 = vpop.f32.mrb[0].mxu0
  %283 = vdwg.mxu0
  %v284 = vmul.f32 %v281, 0.01
  %v285 = vmax.f32 %v281, %v284
  %v286 = vld [vmem:[%s4] sm:$0xff]
  %v287 = vld [vmem:[%s4 + $0x8] sm:$0xff]
  %v288 = vld [vmem:[%s4 + $0x10] sm:$0xff]
  %v289 = vld [vmem:[%s4 + $0x18] sm:$0xff]
  %v290 = vld [vmem:[%s4 + $0x20] sm:$0xff]
  %v291 = vld [vmem:[%s4 + $0x28] sm:$0xff]
  %v292 = vld [vmem:[%s4 + $0x30] sm:$0xff]
  %v293 = vld [vmem:[%s4 + $0x38] sm:$0xff]
  %v294 = vld [vmem:[%s4 + $0x40] sm:$0xff]
  %v295 = vld [vmem:[%s4 + $0x48] sm:$0xff]
  %v296 = vld [vmem:[%s4 + $0x50] sm:$0xff]
  %v297 = vld [vmem:[%s4 + $0x58] sm:$0xff]
  %v298 = vld [vmem:[%s4 + $0x60] sm:$0xff]
  %v299 = vld [vmem:[%s4 + $0x68] sm:$0xff]
  %v300 = vld [vmem:[%s4 + $0x70] sm:$0xff]
  %v301 = vld [vmem:[%s4 + $0x78] sm:$0xff]
  %v302 = vld [vmem:[%s3 + $0x2] sm:$0x1]
  %v303 = vlaneseq
  %v304 = vshrl.u32 %v303, 7
  %v305 = vsub.s32 0, %v304
  %v306 = vrot.slane %v302, %v305
  %307 = vmatprep.subr.mxu0 0.0
  %308 = vmatpush1.msra.mxu0 %v286
  %309 = vmatprep.subr.mxu0 0.0
  %310 = vmatpush1.msra.mxu0 %v287
  %311 = vmatprep.subr.mxu0 0.0
  %312 = vmatpush1.msra.mxu0 %v288
  %313 = vmatprep.subr.mxu0 0.0
  %314 = vmatpush1.msra.mxu0 %v289
  %315 = vmatprep.subr.mxu0 0.0
  %316 = vmatpush1.msra.mxu0 %v290
  %317 = vmatprep.subr.mxu0 0.0
  %318 = vmatpush1.msra.mxu0 %v291
  %319 = vmatprep.subr.mxu0 0.0
  %320 = vmatpush1.msra.mxu0 %v292
  %321 = vmatprep.subr.mxu0 0.0
  %322 = vmatpush1.msra.mxu0 %v293
  %323 = vmatprep.subr.mxu0 0.0
  %324 = vmatpush1.msra.mxu0 %v294
  %325 = vmatprep.subr.mxu0 0.0
  %326 = vmatpush1.msra.mxu0 %v295
  %327 = vmatprep.subr.mxu0 0.0
  %328 = vmatpush1.msra.mxu0 %v296
  %329 = vmatprep.subr.mxu0 0.0
  %330 = vmatpush1.msra.mxu0 %v297
  %331 = vmatprep.subr.mxu0 0.0
  %332 = vmatpush1.msra.mxu0 %v298
  %333 = vmatprep.subr.mxu0 0.0
  %334 = vmatpush1.msra.mxu0 %v299
  %335 = vmatprep.subr.mxu0 0.0
  %336 = vmatpush1.msra.mxu0 %v300
  %337 = vmatprep.subr.mxu0 0.0
  %338 = vmatpush1.msra.mxu0 %v301
  %339 = vmatprep.subr.mxu0 0.0
  %340 = vmatpush1.msra.mxu0 0.0
  %341 = vmatprep.subr.mxu0 0.0
  %342 = vmatpush1.msra.mxu0 0.0
  %343 = vmatprep.subr.mxu0 0.0
  %344 = vmatpush1.msra.mxu0 0.0
  %345 = vmatprep.subr.mxu0 0.0
  %346 = vmatpush1.msra.mxu0 0.0
  %347 = vmatprep.subr.mxu0 0.0
  %348 = vmatpush1.msra.mxu0 0.0
  %349 = vmatprep.subr.mxu0 0.0
  %350 = vmatpush1.msra.mxu0 0.0
  %351 = vmatprep.subr.mxu0 0.0
  %352 = vmatpush1.msra.mxu0 0.0
  %353 = vmatprep.subr.mxu0 0.0
  %354 = vmatpush1.msra.mxu0 0.0
  %355 = vmatprep.subr.mxu0 0.0
  %356 = vmatpush1.msra.mxu0 0.0
  %357 = vmatprep.subr.mxu0 0.0
  %358 = vmatpush1.msra.mxu0 0.0
  %359 = vmatprep.subr.mxu0 0.0
  %360 = vmatpush1.msra.mxu0 0.0
  %361 = vmatprep.subr.mxu0 0.0
  %362 = vmatpush1.msra.mxu0 0.0
  %363 = vmatprep.subr.mxu0 0.0
  %364 = vmatpush1.msra.mxu0 0.0
  %365 = vmatprep.subr.mxu0 0.0
  %366 = vmatpush1.msra.mxu0 0.0
  %367 = vmatprep.subr.mxu0 0.0
  %368 = vmatpush1.msra.mxu0 0.0
  %369 = vmatprep.subr.mxu0 0.0
  %370 = vmatpush1.msra.mxu0 0.0
  %371 = vmatprep.mubr.f32.mxu0 0.0
  %372 = vmatmul.mubr.f32.gmra.mrb[0].mxu0 %v285
  %v373 = vpop.f32.mrb[0].mxu0
  %v374 = vadd.f32 %v306, %v373
  %v375 = vpop.f32.mrb[0].mxu0
  %376 = vdwg.mxu0
  %s377 = scalar_lea.vmem %s4, 128
  %v378 = vld [vmem:[%s377] sm:$0xff]
  %v379 = vld [vmem:[%s377 + $0x8] sm:$0xff]
  %v380 = vld [vmem:[%s377 + $0x10] sm:$0xff]
  %v381 = vld [vmem:[%s377 + $0x18] sm:$0xff]
  %v382 = vld [vmem:[%s377 + $0x20] sm:$0xff]
  %v383 = vld [vmem:[%s377 + $0x28] sm:$0xff]
  %v384 = vld [vmem:[%s377 + $0x30] sm:$0xff]
  %v385 = vld [vmem:[%s377 + $0x38] sm:$0xff]
  %v386 = vld [vmem:[%s377 + $0x40] sm:$0xff]
  %v387 = vld [vmem:[%s377 + $0x48] sm:$0xff]
  %v388 = vld [vmem:[%s377 + $0x50] sm:$0xff]
  %v389 = vld [vmem:[%s377 + $0x58] sm:$0xff]
  %v390 = vld [vmem:[%s377 + $0x60] sm:$0xff]
  %v391 = vld [vmem:[%s377 + $0x68] sm:$0xff]
  %v392 = vld [vmem:[%s377 + $0x70] sm:$0xff]
  %v393 = vld [vmem:[%s377 + $0x78] sm:$0xff]
  %v394 = vld [vmem:[%s3 + $0x3] sm:$0x1]
  %v395 = vlaneseq
  %v396 = vshrl.u32 %v395, 7
  %v397 = vsub.s32 0, %v396
  %v398 = vrot.slane %v394, %v397
  %399 = vmatprep.subr.mxu0 0.0
  %400 = vmatpush1.msra.mxu0 %v378
  %401 = vmatprep.subr.mxu0 0.0
  %402 = vmatpush1.msra.mxu0 %v379
  %403 = vmatprep.subr.mxu0 0.0
  %404 = vmatpush1.msra.mxu0 %v380
  %405 = vmatprep.subr.mxu0 0.0
  %406 = vmatpush1.msra.mxu0 %v381
  %407 = vmatprep.subr.mxu0 0.0
  %408 = vmatpush1.msra.mxu0 %v382
  %409 = vmatprep.subr.mxu0 0.0
  %410 = vmatpush1.msra.mxu0 %v383
  %411 = vmatprep.subr.mxu0 0.0
  %412 = vmatpush1.msra.mxu0 %v384
  %413 = vmatprep.subr.mxu0 0.0
  %414 = vmatpush1.msra.mxu0 %v385
  %415 = vmatprep.subr.mxu0 0.0
  %416 = vmatpush1.msra.mxu0 %v386
  %417 = vmatprep.subr.mxu0 0.0
  %418 = vmatpush1.msra.mxu0 %v387
  %419 = vmatprep.subr.mxu0 0.0
  %420 = vmatpush1.msra.mxu0 %v388
  %421 = vmatprep.subr.mxu0 0.0
  %422 = vmatpush1.msra.mxu0 %v389
  %423 = vmatprep.subr.mxu0 0.0
  %424 = vmatpush1.msra.mxu0 %v390
  %425 = vmatprep.subr.mxu0 0.0
  %426 = vmatpush1.msra.mxu0 %v391
  %427 = vmatprep.subr.mxu0 0.0
  %428 = vmatpush1.msra.mxu0 %v392
  %429 = vmatprep.subr.mxu0 0.0
  %430 = vmatpush1.msra.mxu0 %v393
  %431 = vmatprep.subr.mxu0 0.0
  %432 = vmatpush1.msra.mxu0 0.0
  %433 = vmatprep.subr.mxu0 0.0
  %434 = vmatpush1.msra.mxu0 0.0
  %435 = vmatprep.subr.mxu0 0.0
  %436 = vmatpush1.msra.mxu0 0.0
  %437 = vmatprep.subr.mxu0 0.0
  %438 = vmatpush1.msra.mxu0 0.0
  %439 = vmatprep.subr.mxu0 0.0
  %440 = vmatpush1.msra.mxu0 0.0
  %441 = vmatprep.subr.mxu0 0.0
  %442 = vmatpush1.msra.mxu0 0.0
  %443 = vmatprep.subr.mxu0 0.0
  %444 = vmatpush1.msra.mxu0 0.0
  %445 = vmatprep.subr.mxu0 0.0
  %446 = vmatpush1.msra.mxu0 0.0
  %447 = vmatprep.subr.mxu0 0.0
  %448 = vmatpush1.msra.mxu0 0.0
  %449 = vmatprep.subr.mxu0 0.0
  %450 = vmatpush1.msra.mxu0 0.0
  %451 = vmatprep.subr.mxu0 0.0
  %452 = vmatpush1.msra.mxu0 0.0
  %453 = vmatprep.subr.mxu0 0.0
  %454 = vmatpush1.msra.mxu0 0.0
  %455 = vmatprep.subr.mxu0 0.0
  %456 = vmatpush1.msra.mxu0 0.0
  %457 = vmatprep.subr.mxu0 0.0
  %458 = vmatpush1.msra.mxu0 0.0
  %459 = vmatprep.subr.mxu0 0.0
  %460 = vmatpush1.msra.mxu0 0.0
  %461 = vmatprep.subr.mxu0 0.0
  %462 = vmatpush1.msra.mxu0 0.0
  %463 = vmatprep.mubr.f32.mxu0 0.0
  %464 = vmatmul.mubr.f32.gmra.mrb[0].mxu0 %v285
  %v465 = vpop.f32.mrb[0].mxu0
  %v466 = vadd.f32 %v398, %v465
  %v467 = vpop.f32.mrb[0].mxu0
  %468 = vdwg.mxu0
  %v469 = vand.u32 2147483647, %v374
  %vm470 = vcmp.gt.f32.partialorder %v469, 2.4142137
  %vm471 = vcmp.gt.f32.partialorder %v469, 0.41421357
  %vm472 = vmxor %vm470, 1
  %vm473 = vmand %vm471, %vm472
  %v474 = vadd.f32 %v469, 1.0
  %v475 = vsel %vm470, %v469, %v474
  %v476 = vrcp.pop %v475
  %v477 = vmul.f32 %v475, %v476
  %v478 = vsub.f32 2.0, %v477
  %v479 = vmul.f32 %v476, %v478
  %v480 = vsub.f32 0.0, %v479
  %v481 = vsub.f32 %v469, 1.0
  %v482 = vmul.f32 %v481, %v479
  %v483 = vsel %vm473, %v482, %v469
  %v484 = vsel %vm470, %v480, %v483
  %v485 = vsel %vm473, 0.49951324, 0.0
  %v486 = vsel %vm470, 0.9990265, %v485
  %v487 = vmul.f32 %v484, %v484
  %v488 = vmul.f32 %v487, 0.051221814
  %v489 = vadd.f32 %v488, -0.08826208
  %v490 = vmul.f32 %v489, %v487
  %v491 = vadd.f32 %v490, 0.12705824
  %v492 = vmul.f32 %v491, %v487
  %v493 = vadd.f32 %v492, -0.21199755
  %v494 = vmul.f32 %v493, %v487
  %v495 = vadd.f32 %v494, 0.636
  %v496 = vmul.f32 %v495, %v484
  %v497 = vadd.f32 %v486, %v496
  %vm498 = vcmp.lt.f32.partialorder %v374, 0.0
  %v499 = vsub.f32 0.0, %v497
  %v500 = vsel %vm498, %v499, %v497
  %v501 = vmul.f32 %v500, 1.442695
  %v502 = vpow.pop %v501
  %v503 = vmul.f32 %v502, %v20
  %v504 = vadd.f32 %v503, %v466
  %v505 = vadd.f32 %v500, 0.0
  %s506 = scalar_lea.vmem %s1, 16
  %v507 = vld [vmem:[%s506] sm:$0xff]
  %v508 = vld [vmem:[%s506 + $0x8] sm:$0xff]
  %v510 = vsel %vm23, %v504, 0
  %512 = vmatprep.subr.mxu0 0.0
  %513 = vmatpush1.msra.mxu0 %v507
  %514 = vmatprep.subr.mxu0 0.0
  %515 = vmatpush1.msra.mxu0 %v508
  %516 = vmatprep.subr.mxu0 0.0
  %517 = vmatpush1.msra.mxu0 0.0
  %518 = vmatprep.subr.mxu0 0.0
  %519 = vmatpush1.msra.mxu0 0.0
  %520 = vmatprep.subr.mxu0 0.0
  %521 = vmatpush1.msra.mxu0 0.0
  %522 = vmatprep.subr.mxu0 0.0
  %523 = vmatpush1.msra.mxu0 0.0
  %524 = vmatprep.subr.mxu0 0.0
  %525 = vmatpush1.msra.mxu0 0.0
  %526 = vmatprep.subr.mxu0 0.0
  %527 = vmatpush1.msra.mxu0 0.0
  %528 = vmatprep.subr.mxu0 0.0
  %529 = vmatpush1.msra.mxu0 0.0
  %530 = vmatprep.subr.mxu0 0.0
  %531 = vmatpush1.msra.mxu0 0.0
  %532 = vmatprep.subr.mxu0 0.0
  %533 = vmatpush1.msra.mxu0 0.0
  %534 = vmatprep.subr.mxu0 0.0
  %535 = vmatpush1.msra.mxu0 0.0
  %536 = vmatprep.subr.mxu0 0.0
  %537 = vmatpush1.msra.mxu0 0.0
  %538 = vmatprep.subr.mxu0 0.0
  %539 = vmatpush1.msra.mxu0 0.0
  %540 = vmatprep.subr.mxu0 0.0
  %541 = vmatpush1.msra.mxu0 0.0
  %542 = vmatprep.subr.mxu0 0.0
  %543 = vmatpush1.msra.mxu0 0.0
  %544 = vmatprep.subr.mxu0 0.0
  %545 = vmatpush1.msra.mxu0 0.0
  %546 = vmatprep.subr.mxu0 0.0
  %547 = vmatpush1.msra.mxu0 0.0
  %548 = vmatprep.subr.mxu0 0.0
  %549 = vmatpush1.msra.mxu0 0.0
  %550 = vmatprep.subr.mxu0 0.0
  %551 = vmatpush1.msra.mxu0 0.0
  %552 = vmatprep.subr.mxu0 0.0
  %553 = vmatpush1.msra.mxu0 0.0
  %554 = vmatprep.subr.mxu0 0.0
  %555 = vmatpush1.msra.mxu0 0.0
  %556 = vmatprep.subr.mxu0 0.0
  %557 = vmatpush1.msra.mxu0 0.0
  %558 = vmatprep.subr.mxu0 0.0
  %559 = vmatpush1.msra.mxu0 0.0
  %560 = vmatprep.subr.mxu0 0.0
  %561 = vmatpush1.msra.mxu0 0.0
  %562 = vmatprep.subr.mxu0 0.0
  %563 = vmatpush1.msra.mxu0 0.0
  %564 = vmatprep.subr.mxu0 0.0
  %565 = vmatpush1.msra.mxu0 0.0
  %566 = vmatprep.subr.mxu0 0.0
  %567 = vmatpush1.msra.mxu0 0.0
  %568 = vmatprep.subr.mxu0 0.0
  %569 = vmatpush1.msra.mxu0 0.0
  %570 = vmatprep.subr.mxu0 0.0
  %571 = vmatpush1.msra.mxu0 0.0
  %572 = vmatprep.subr.mxu0 0.0
  %573 = vmatpush1.msra.mxu0 0.0
  %574 = vmatprep.subr.mxu0 0.0
  %575 = vmatpush1.msra.mxu0 0.0
  %576 = vmatprep.mubr.f32.mxu0 0.0
  %577 = vmatmul.mubr.f32.gmra.mrb[0].mxu0 %v510
  %v578 = vpop.f32.mrb[0].mxu0
  %v579 = vadd.f32 0.0, %v578
  %v580 = vpop.f32.mrb[0].mxu0
  %581 = vdwg.mxu0
  %v582 = vmul.f32 %v579, 0.01
  %v583 = vmax.f32 %v579, %v582
  %s584 = scalar_lea.vmem %s2, 256
  %v585 = vld [vmem:[%s584] sm:$0xff]
  %v586 = vld [vmem:[%s584 + $0x8] sm:$0xff]
  %v587 = vld [vmem:[%s584 + $0x10] sm:$0xff]
  %v588 = vld [vmem:[%s584 + $0x18] sm:$0xff]
  %v589 = vld [vmem:[%s584 + $0x20] sm:$0xff]
  %v590 = vld [vmem:[%s584 + $0x28] sm:$0xff]
  %v591 = vld [vmem:[%s584 + $0x30] sm:$0xff]
  %v592 = vld [vmem:[%s584 + $0x38] sm:$0xff]
  %v593 = vld [vmem:[%s584 + $0x40] sm:$0xff]
  %v594 = vld [vmem:[%s584 + $0x48] sm:$0xff]
  %v595 = vld [vmem:[%s584 + $0x50] sm:$0xff]
  %v596 = vld [vmem:[%s584 + $0x58] sm:$0xff]
  %v597 = vld [vmem:[%s584 + $0x60] sm:$0xff]
  %v598 = vld [vmem:[%s584 + $0x68] sm:$0xff]
  %v599 = vld [vmem:[%s584 + $0x70] sm:$0xff]
  %v600 = vld [vmem:[%s584 + $0x78] sm:$0xff]
  %s601 = scalar_lea.vmem %s3, 4
  %v602 = vld [vmem:[%s601] sm:$0x1]
  %v603 = vlaneseq
  %v604 = vshrl.u32 %v603, 7
  %v605 = vsub.s32 0, %v604
  %v606 = vrot.slane %v602, %v605
  %607 = vmatprep.subr.mxu0 0.0
  %608 = vmatpush1.msra.mxu0 %v585
  %609 = vmatprep.subr.mxu0 0.0
  %610 = vmatpush1.msra.mxu0 %v586
  %611 = vmatprep.subr.mxu0 0.0
  %612 = vmatpush1.msra.mxu0 %v587
  %613 = vmatprep.subr.mxu0 0.0
  %614 = vmatpush1.msra.mxu0 %v588
  %615 = vmatprep.subr.mxu0 0.0
  %616 = vmatpush1.msra.mxu0 %v589
  %617 = vmatprep.subr.mxu0 0.0
  %618 = vmatpush1.msra.mxu0 %v590
  %619 = vmatprep.subr.mxu0 0.0
  %620 = vmatpush1.msra.mxu0 %v591
  %621 = vmatprep.subr.mxu0 0.0
  %622 = vmatpush1.msra.mxu0 %v592
  %623 = vmatprep.subr.mxu0 0.0
  %624 = vmatpush1.msra.mxu0 %v593
  %625 = vmatprep.subr.mxu0 0.0
  %626 = vmatpush1.msra.mxu0 %v594
  %627 = vmatprep.subr.mxu0 0.0
  %628 = vmatpush1.msra.mxu0 %v595
  %629 = vmatprep.subr.mxu0 0.0
  %630 = vmatpush1.msra.mxu0 %v596
  %631 = vmatprep.subr.mxu0 0.0
  %632 = vmatpush1.msra.mxu0 %v597
  %633 = vmatprep.subr.mxu0 0.0
  %634 = vmatpush1.msra.mxu0 %v598
  %635 = vmatprep.subr.mxu0 0.0
  %636 = vmatpush1.msra.mxu0 %v599
  %637 = vmatprep.subr.mxu0 0.0
  %638 = vmatpush1.msra.mxu0 %v600
  %639 = vmatprep.subr.mxu0 0.0
  %640 = vmatpush1.msra.mxu0 0.0
  %641 = vmatprep.subr.mxu0 0.0
  %642 = vmatpush1.msra.mxu0 0.0
  %643 = vmatprep.subr.mxu0 0.0
  %644 = vmatpush1.msra.mxu0 0.0
  %645 = vmatprep.subr.mxu0 0.0
  %646 = vmatpush1.msra.mxu0 0.0
  %647 = vmatprep.subr.mxu0 0.0
  %648 = vmatpush1.msra.mxu0 0.0
  %649 = vmatprep.subr.mxu0 0.0
  %650 = vmatpush1.msra.mxu0 0.0
  %651 = vmatprep.subr.mxu0 0.0
  %652 = vmatpush1.msra.mxu0 0.0
  %653 = vmatprep.subr.mxu0 0.0
  %654 = vmatpush1.msra.mxu0 0.0
  %655 = vmatprep.subr.mxu0 0.0
  %656 = vmatpush1.msra.mxu0 0.0
  %657 = vmatprep.subr.mxu0 0.0
  %658 = vmatpush1.msra.mxu0 0.0
  %659 = vmatprep.subr.mxu0 0.0
  %660 = vmatpush1.msra.mxu0 0.0
  %661 = vmatprep.subr.mxu0 0.0
  %662 = vmatpush1.msra.mxu0 0.0
  %663 = vmatprep.subr.mxu0 0.0
  %664 = vmatpush1.msra.mxu0 0.0
  %665 = vmatprep.subr.mxu0 0.0
  %666 = vmatpush1.msra.mxu0 0.0
  %667 = vmatprep.subr.mxu0 0.0
  %668 = vmatpush1.msra.mxu0 0.0
  %669 = vmatprep.subr.mxu0 0.0
  %670 = vmatpush1.msra.mxu0 0.0
  %671 = vmatprep.mubr.f32.mxu0 0.0
  %672 = vmatmul.mubr.f32.gmra.mrb[0].mxu0 %v583
  %v673 = vpop.f32.mrb[0].mxu0
  %v674 = vadd.f32 %v606, %v673
  %v675 = vpop.f32.mrb[0].mxu0
  %676 = vdwg.mxu0
  %v677 = vmul.f32 %v674, 0.01
  %v678 = vmax.f32 %v674, %v677
  %s679 = scalar_lea.vmem %s2, 384
  %v680 = vld [vmem:[%s679] sm:$0xff]
  %v681 = vld [vmem:[%s679 + $0x8] sm:$0xff]
  %v682 = vld [vmem:[%s679 + $0x10] sm:$0xff]
  %v683 = vld [vmem:[%s679 + $0x18] sm:$0xff]
  %v684 = vld [vmem:[%s679 + $0x20] sm:$0xff]
  %v685 = vld [vmem:[%s679 + $0x28] sm:$0xff]
  %v686 = vld [vmem:[%s679 + $0x30] sm:$0xff]
  %v687 = vld [vmem:[%s679 + $0x38] sm:$0xff]
  %v688 = vld [vmem:[%s679 + $0x40] sm:$0xff]
  %v689 = vld [vmem:[%s679 + $0x48] sm:$0xff]
  %v690 = vld [vmem:[%s679 + $0x50] sm:$0xff]
  %v691 = vld [vmem:[%s679 + $0x58] sm:$0xff]
  %v692 = vld [vmem:[%s679 + $0x60] sm:$0xff]
  %v693 = vld [vmem:[%s679 + $0x68] sm:$0xff]
  %v694 = vld [vmem:[%s679 + $0x70] sm:$0xff]
  %v695 = vld [vmem:[%s679 + $0x78] sm:$0xff]
  %v696 = vld [vmem:[%s601 + $0x1] sm:$0x1]
  %v697 = vlaneseq
  %v698 = vshrl.u32 %v697, 7
  %v699 = vsub.s32 0, %v698
  %v700 = vrot.slane %v696, %v699
  %701 = vmatprep.subr.mxu0 0.0
  %702 = vmatpush1.msra.mxu0 %v680
  %703 = vmatprep.subr.mxu0 0.0
  %704 = vmatpush1.msra.mxu0 %v681
  %705 = vmatprep.subr.mxu0 0.0
  %706 = vmatpush1.msra.mxu0 %v682
  %707 = vmatprep.subr.mxu0 0.0
  %708 = vmatpush1.msra.mxu0 %v683
  %709 = vmatprep.subr.mxu0 0.0
  %710 = vmatpush1.msra.mxu0 %v684
  %711 = vmatprep.subr.mxu0 0.0
  %712 = vmatpush1.msra.mxu0 %v685
  %713 = vmatprep.subr.mxu0 0.0
  %714 = vmatpush1.msra.mxu0 %v686
  %715 = vmatprep.subr.mxu0 0.0
  %716 = vmatpush1.msra.mxu0 %v687
  %717 = vmatprep.subr.mxu0 0.0
  %718 = vmatpush1.msra.mxu0 %v688
  %719 = vmatprep.subr.mxu0 0.0
  %720 = vmatpush1.msra.mxu0 %v689
  %721 = vmatprep.subr.mxu0 0.0
  %722 = vmatpush1.msra.mxu0 %v690
  %723 = vmatprep.subr.mxu0 0.0
  %724 = vmatpush1.msra.mxu0 %v691
  %725 = vmatprep.subr.mxu0 0.0
  %726 = vmatpush1.msra.mxu0 %v692
  %727 = vmatprep.subr.mxu0 0.0
  %728 = vmatpush1.msra.mxu0 %v693
  %729 = vmatprep.subr.mxu0 0.0
  %730 = vmatpush1.msra.mxu0 %v694
  %731 = vmatprep.subr.mxu0 0.0
  %732 = vmatpush1.msra.mxu0 %v695
  %733 = vmatprep.subr.mxu0 0.0
  %734 = vmatpush1.msra.mxu0 0.0
  %735 = vmatprep.subr.mxu0 0.0
  %736 = vmatpush1.msra.mxu0 0.0
  %737 = vmatprep.subr.mxu0 0.0
  %738 = vmatpush1.msra.mxu0 0.0
  %739 = vmatprep.subr.mxu0 0.0
  %740 = vmatpush1.msra.mxu0 0.0
  %741 = vmatprep.subr.mxu0 0.0
  %742 = vmatpush1.msra.mxu0 0.0
  %743 = vmatprep.subr.mxu0 0.0
  %744 = vmatpush1.msra.mxu0 0.0
  %745 = vmatprep.subr.mxu0 0.0
  %746 = vmatpush1.msra.mxu0 0.0
  %747 = vmatprep.subr.mxu0 0.0
  %748 = vmatpush1.msra.mxu0 0.0
  %749 = vmatprep.subr.mxu0 0.0
  %750 = vmatpush1.msra.mxu0 0.0
  %751 = vmatprep.subr.mxu0 0.0
  %752 = vmatpush1.msra.mxu0 0.0
  %753 = vmatprep.subr.mxu0 0.0
  %754 = vmatpush1.msra.mxu0 0.0
  %755 = vmatprep.subr.mxu0 0.0
  %756 = vmatpush1.msra.mxu0 0.0
  %757 = vmatprep.subr.mxu0 0.0
  %758 = vmatpush1.msra.mxu0 0.0
  %759 = vmatprep.subr.mxu0 0.0
  %760 = vmatpush1.msra.mxu0 0.0
  %761 = vmatprep.subr.mxu0 0.0
  %762 = vmatpush1.msra.mxu0 0.0
  %763 = vmatprep.subr.mxu0 0.0
  %764 = vmatpush1.msra.mxu0 0.0
  %765 = vmatprep.mubr.f32.mxu0 0.0
  %766 = vmatmul.mubr.f32.gmra.mrb[0].mxu0 %v678
  %v767 = vpop.f32.mrb[0].mxu0
  %v768 = vadd.f32 %v700, %v767
  %v769 = vpop.f32.mrb[0].mxu0
  %770 = vdwg.mxu0
  %v771 = vmul.f32 %v768, 0.01
  %v772 = vmax.f32 %v768, %v771
  %s773 = scalar_lea.vmem %s4, 256
  %v774 = vld [vmem:[%s773] sm:$0xff]
  %v775 = vld [vmem:[%s773 + $0x8] sm:$0xff]
  %v776 = vld [vmem:[%s773 + $0x10] sm:$0xff]
  %v777 = vld [vmem:[%s773 + $0x18] sm:$0xff]
  %v778 = vld [vmem:[%s773 + $0x20] sm:$0xff]
  %v779 = vld [vmem:[%s773 + $0x28] sm:$0xff]
  %v780 = vld [vmem:[%s773 + $0x30] sm:$0xff]
  %v781 = vld [vmem:[%s773 + $0x38] sm:$0xff]
  %v782 = vld [vmem:[%s773 + $0x40] sm:$0xff]
  %v783 = vld [vmem:[%s773 + $0x48] sm:$0xff]
  %v784 = vld [vmem:[%s773 + $0x50] sm:$0xff]
  %v785 = vld [vmem:[%s773 + $0x58] sm:$0xff]
  %v786 = vld [vmem:[%s773 + $0x60] sm:$0xff]
  %v787 = vld [vmem:[%s773 + $0x68] sm:$0xff]
  %v788 = vld [vmem:[%s773 + $0x70] sm:$0xff]
  %v789 = vld [vmem:[%s773 + $0x78] sm:$0xff]
  %v790 = vld [vmem:[%s601 + $0x2] sm:$0x1]
  %v791 = vlaneseq
  %v792 = vshrl.u32 %v791, 7
  %v793 = vsub.s32 0, %v792
  %v794 = vrot.slane %v790, %v793
  %795 = vmatprep.subr.mxu0 0.0
  %796 = vmatpush1.msra.mxu0 %v774
  %797 = vmatprep.subr.mxu0 0.0
  %798 = vmatpush1.msra.mxu0 %v775
  %799 = vmatprep.subr.mxu0 0.0
  %800 = vmatpush1.msra.mxu0 %v776
  %801 = vmatprep.subr.mxu0 0.0
  %802 = vmatpush1.msra.mxu0 %v777
  %803 = vmatprep.subr.mxu0 0.0
  %804 = vmatpush1.msra.mxu0 %v778
  %805 = vmatprep.subr.mxu0 0.0
  %806 = vmatpush1.msra.mxu0 %v779
  %807 = vmatprep.subr.mxu0 0.0
  %808 = vmatpush1.msra.mxu0 %v780
  %809 = vmatprep.subr.mxu0 0.0
  %810 = vmatpush1.msra.mxu0 %v781
  %811 = vmatprep.subr.mxu0 0.0
  %812 = vmatpush1.msra.mxu0 %v782
  %813 = vmatprep.subr.mxu0 0.0
  %814 = vmatpush1.msra.mxu0 %v783
  %815 = vmatprep.subr.mxu0 0.0
  %816 = vmatpush1.msra.mxu0 %v784
  %817 = vmatprep.subr.mxu0 0.0
  %818 = vmatpush1.msra.mxu0 %v785
  %819 = vmatprep.subr.mxu0 0.0
  %820 = vmatpush1.msra.mxu0 %v786
  %821 = vmatprep.subr.mxu0 0.0
  %822 = vmatpush1.msra.mxu0 %v787
  %823 = vmatprep.subr.mxu0 0.0
  %824 = vmatpush1.msra.mxu0 %v788
  %825 = vmatprep.subr.mxu0 0.0
  %826 = vmatpush1.msra.mxu0 %v789
  %827 = vmatprep.subr.mxu0 0.0
  %828 = vmatpush1.msra.mxu0 0.0
  %829 = vmatprep.subr.mxu0 0.0
  %830 = vmatpush1.msra.mxu0 0.0
  %831 = vmatprep.subr.mxu0 0.0
  %832 = vmatpush1.msra.mxu0 0.0
  %833 = vmatprep.subr.mxu0 0.0
  %834 = vmatpush1.msra.mxu0 0.0
  %835 = vmatprep.subr.mxu0 0.0
  %836 = vmatpush1.msra.mxu0 0.0
  %837 = vmatprep.subr.mxu0 0.0
  %838 = vmatpush1.msra.mxu0 0.0
  %839 = vmatprep.subr.mxu0 0.0
  %840 = vmatpush1.msra.mxu0 0.0
  %841 = vmatprep.subr.mxu0 0.0
  %842 = vmatpush1.msra.mxu0 0.0
  %843 = vmatprep.subr.mxu0 0.0
  %844 = vmatpush1.msra.mxu0 0.0
  %845 = vmatprep.subr.mxu0 0.0
  %846 = vmatpush1.msra.mxu0 0.0
  %847 = vmatprep.subr.mxu0 0.0
  %848 = vmatpush1.msra.mxu0 0.0
  %849 = vmatprep.subr.mxu0 0.0
  %850 = vmatpush1.msra.mxu0 0.0
  %851 = vmatprep.subr.mxu0 0.0
  %852 = vmatpush1.msra.mxu0 0.0
  %853 = vmatprep.subr.mxu0 0.0
  %854 = vmatpush1.msra.mxu0 0.0
  %855 = vmatprep.subr.mxu0 0.0
  %856 = vmatpush1.msra.mxu0 0.0
  %857 = vmatprep.subr.mxu0 0.0
  %858 = vmatpush1.msra.mxu0 0.0
  %859 = vmatprep.mubr.f32.mxu0 0.0
  %860 = vmatmul.mubr.f32.gmra.mrb[0].mxu0 %v772
  %v861 = vpop.f32.mrb[0].mxu0
  %v862 = vadd.f32 %v794, %v861
  %v863 = vpop.f32.mrb[0].mxu0
  %864 = vdwg.mxu0
  %s865 = scalar_lea.vmem %s4, 384
  %v866 = vld [vmem:[%s865] sm:$0xff]
  %v867 = vld [vmem:[%s865 + $0x8] sm:$0xff]
  %v868 = vld [vmem:[%s865 + $0x10] sm:$0xff]
  %v869 = vld [vmem:[%s865 + $0x18] sm:$0xff]
  %v870 = vld [vmem:[%s865 + $0x20] sm:$0xff]
  %v871 = vld [vmem:[%s865 + $0x28] sm:$0xff]
  %v872 = vld [vmem:[%s865 + $0x30] sm:$0xff]
  %v873 = vld [vmem:[%s865 + $0x38] sm:$0xff]
  %v874 = vld [vmem:[%s865 + $0x40] sm:$0xff]
  %v875 = vld [vmem:[%s865 + $0x48] sm:$0xff]
  %v876 = vld [vmem:[%s865 + $0x50] sm:$0xff]
  %v877 = vld [vmem:[%s865 + $0x58] sm:$0xff]
  %v878 = vld [vmem:[%s865 + $0x60] sm:$0xff]
  %v879 = vld [vmem:[%s865 + $0x68] sm:$0xff]
  %v880 = vld [vmem:[%s865 + $0x70] sm:$0xff]
  %v881 = vld [vmem:[%s865 + $0x78] sm:$0xff]
  %v882 = vld [vmem:[%s601 + $0x3] sm:$0x1]
  %v883 = vlaneseq
  %v884 = vshrl.u32 %v883, 7
  %v885 = vsub.s32 0, %v884
  %v886 = vrot.slane %v882, %v885
  %887 = vmatprep.subr.mxu0 0.0
  %888 = vmatpush1.msra.mxu0 %v866
  %889 = vmatprep.subr.mxu0 0.0
  %890 = vmatpush1.msra.mxu0 %v867
  %891 = vmatprep.subr.mxu0 0.0
  %892 = vmatpush1.msra.mxu0 %v868
  %893 = vmatprep.subr.mxu0 0.0
  %894 = vmatpush1.msra.mxu0 %v869
  %895 = vmatprep.subr.mxu0 0.0
  %896 = vmatpush1.msra.mxu0 %v870
  %897 = vmatprep.subr.mxu0 0.0
  %898 = vmatpush1.msra.mxu0 %v871
  %899 = vmatprep.subr.mxu0 0.0
  %900 = vmatpush1.msra.mxu0 %v872
  %901 = vmatprep.subr.mxu0 0.0
  %902 = vmatpush1.msra.mxu0 %v873
  %903 = vmatprep.subr.mxu0 0.0
  %904 = vmatpush1.msra.mxu0 %v874
  %905 = vmatprep.subr.mxu0 0.0
  %906 = vmatpush1.msra.mxu0 %v875
  %907 = vmatprep.subr.mxu0 0.0
  %908 = vmatpush1.msra.mxu0 %v876
  %909 = vmatprep.subr.mxu0 0.0
  %910 = vmatpush1.msra.mxu0 %v877
  %911 = vmatprep.subr.mxu0 0.0
  %912 = vmatpush1.msra.mxu0 %v878
  %913 = vmatprep.subr.mxu0 0.0
  %914 = vmatpush1.msra.mxu0 %v879
  %915 = vmatprep.subr.mxu0 0.0
  %916 = vmatpush1.msra.mxu0 %v880
  %917 = vmatprep.subr.mxu0 0.0
  %918 = vmatpush1.msra.mxu0 %v881
  %919 = vmatprep.subr.mxu0 0.0
  %920 = vmatpush1.msra.mxu0 0.0
  %921 = vmatprep.subr.mxu0 0.0
  %922 = vmatpush1.msra.mxu0 0.0
  %923 = vmatprep.subr.mxu0 0.0
  %924 = vmatpush1.msra.mxu0 0.0
  %925 = vmatprep.subr.mxu0 0.0
  %926 = vmatpush1.msra.mxu0 0.0
  %927 = vmatprep.subr.mxu0 0.0
  %928 = vmatpush1.msra.mxu0 0.0
  %929 = vmatprep.subr.mxu0 0.0
  %930 = vmatpush1.msra.mxu0 0.0
  %931 = vmatprep.subr.mxu0 0.0
  %932 = vmatpush1.msra.mxu0 0.0
  %933 = vmatprep.subr.mxu0 0.0
  %934 = vmatpush1.msra.mxu0 0.0
  %935 = vmatprep.subr.mxu0 0.0
  %936 = vmatpush1.msra.mxu0 0.0
  %937 = vmatprep.subr.mxu0 0.0
  %938 = vmatpush1.msra.mxu0 0.0
  %939 = vmatprep.subr.mxu0 0.0
  %940 = vmatpush1.msra.mxu0 0.0
  %941 = vmatprep.subr.mxu0 0.0
  %942 = vmatpush1.msra.mxu0 0.0
  %943 = vmatprep.subr.mxu0 0.0
  %944 = vmatpush1.msra.mxu0 0.0
  %945 = vmatprep.subr.mxu0 0.0
  %946 = vmatpush1.msra.mxu0 0.0
  %947 = vmatprep.subr.mxu0 0.0
  %948 = vmatpush1.msra.mxu0 0.0
  %949 = vmatprep.subr.mxu0 0.0
  %950 = vmatpush1.msra.mxu0 0.0
  %951 = vmatprep.mubr.f32.mxu0 0.0
  %952 = vmatmul.mubr.f32.gmra.mrb[0].mxu0 %v772
  %v953 = vpop.f32.mrb[0].mxu0
  %v954 = vadd.f32 %v886, %v953
  %v955 = vpop.f32.mrb[0].mxu0
  %956 = vdwg.mxu0
  %v957 = vand.u32 2147483647, %v862
  %vm958 = vcmp.gt.f32.partialorder %v957, 2.4142137
  %vm959 = vcmp.gt.f32.partialorder %v957, 0.41421357
  %vm960 = vmxor %vm958, 1
  %vm961 = vmand %vm959, %vm960
  %v962 = vadd.f32 %v957, 1.0
  %v963 = vsel %vm958, %v957, %v962
  %v964 = vrcp.pop %v963
  %v965 = vmul.f32 %v963, %v964
  %v966 = vsub.f32 2.0, %v965
  %v967 = vmul.f32 %v964, %v966
  %v968 = vsub.f32 0.0, %v967
  %v969 = vsub.f32 %v957, 1.0
  %v970 = vmul.f32 %v969, %v967
  %v971 = vsel %vm961, %v970, %v957
  %v972 = vsel %vm958, %v968, %v971
  %v973 = vsel %vm961, 0.49951324, 0.0
  %v974 = vsel %vm958, 0.9990265, %v973
  %v975 = vmul.f32 %v972, %v972
  %v976 = vmul.f32 %v975, 0.051221814
  %v977 = vadd.f32 %v976, -0.08826208
  %v978 = vmul.f32 %v977, %v975
  %v979 = vadd.f32 %v978, 0.12705824
  %v980 = vmul.f32 %v979, %v975
  %v981 = vadd.f32 %v980, -0.21199755
  %v982 = vmul.f32 %v981, %v975
  %v983 = vadd.f32 %v982, 0.636
  %v984 = vmul.f32 %v983, %v972
  %v985 = vadd.f32 %v974, %v984
  %vm986 = vcmp.lt.f32.partialorder %v862, 0.0
  %v987 = vsub.f32 0.0, %v985
  %v988 = vsel %vm986, %v987, %v985
  %v989 = vmul.f32 %v988, 1.442695
  %v990 = vpow.pop %v989
  %v991 = vmul.f32 %v990, %v504
  %v992 = vadd.f32 %v991, %v954
  %v993 = vadd.f32 %v505, %v988
  %s994 = scalar_lea.vmem %s1, 32
  %v995 = vld [vmem:[%s994] sm:$0xff]
  %v996 = vld [vmem:[%s994 + $0x8] sm:$0xff]
  %v998 = vsel %vm23, %v992, 0
  %1000 = vmatprep.subr.mxu0 0.0
  %1001 = vmatpush1.msra.mxu0 %v995
  %1002 = vmatprep.subr.mxu0 0.0
  %1003 = vmatpush1.msra.mxu0 %v996
  %1004 = vmatprep.subr.mxu0 0.0
  %1005 = vmatpush1.msra.mxu0 0.0
  %1006 = vmatprep.subr.mxu0 0.0
  %1007 = vmatpush1.msra.mxu0 0.0
  %1008 = vmatprep.subr.mxu0 0.0
  %1009 = vmatpush1.msra.mxu0 0.0
  %1010 = vmatprep.subr.mxu0 0.0
  %1011 = vmatpush1.msra.mxu0 0.0
  %1012 = vmatprep.subr.mxu0 0.0
  %1013 = vmatpush1.msra.mxu0 0.0
  %1014 = vmatprep.subr.mxu0 0.0
  %1015 = vmatpush1.msra.mxu0 0.0
  %1016 = vmatprep.subr.mxu0 0.0
  %1017 = vmatpush1.msra.mxu0 0.0
  %1018 = vmatprep.subr.mxu0 0.0
  %1019 = vmatpush1.msra.mxu0 0.0
  %1020 = vmatprep.subr.mxu0 0.0
  %1021 = vmatpush1.msra.mxu0 0.0
  %1022 = vmatprep.subr.mxu0 0.0
  %1023 = vmatpush1.msra.mxu0 0.0
  %1024 = vmatprep.subr.mxu0 0.0
  %1025 = vmatpush1.msra.mxu0 0.0
  %1026 = vmatprep.subr.mxu0 0.0
  %1027 = vmatpush1.msra.mxu0 0.0
  %1028 = vmatprep.subr.mxu0 0.0
  %1029 = vmatpush1.msra.mxu0 0.0
  %1030 = vmatprep.subr.mxu0 0.0
  %1031 = vmatpush1.msra.mxu0 0.0
  %1032 = vmatprep.subr.mxu0 0.0
  %1033 = vmatpush1.msra.mxu0 0.0
  %1034 = vmatprep.subr.mxu0 0.0
  %1035 = vmatpush1.msra.mxu0 0.0
  %1036 = vmatprep.subr.mxu0 0.0
  %1037 = vmatpush1.msra.mxu0 0.0
  %1038 = vmatprep.subr.mxu0 0.0
  %1039 = vmatpush1.msra.mxu0 0.0
  %1040 = vmatprep.subr.mxu0 0.0
  %1041 = vmatpush1.msra.mxu0 0.0
  %1042 = vmatprep.subr.mxu0 0.0
  %1043 = vmatpush1.msra.mxu0 0.0
  %1044 = vmatprep.subr.mxu0 0.0
  %1045 = vmatpush1.msra.mxu0 0.0
  %1046 = vmatprep.subr.mxu0 0.0
  %1047 = vmatpush1.msra.mxu0 0.0
  %1048 = vmatprep.subr.mxu0 0.0
  %1049 = vmatpush1.msra.mxu0 0.0
  %1050 = vmatprep.subr.mxu0 0.0
  %1051 = vmatpush1.msra.mxu0 0.0
  %1052 = vmatprep.subr.mxu0 0.0
  %1053 = vmatpush1.msra.mxu0 0.0
  %1054 = vmatprep.subr.mxu0 0.0
  %1055 = vmatpush1.msra.mxu0 0.0
  %1056 = vmatprep.subr.mxu0 0.0
  %1057 = vmatpush1.msra.mxu0 0.0
  %1058 = vmatprep.subr.mxu0 0.0
  %1059 = vmatpush1.msra.mxu0 0.0
  %1060 = vmatprep.subr.mxu0 0.0
  %1061 = vmatpush1.msra.mxu0 0.0
  %1062 = vmatprep.subr.mxu0 0.0
  %1063 = vmatpush1.msra.mxu0 0.0
  %1064 = vmatprep.mubr.f32.mxu0 0.0
  %1065 = vmatmul.mubr.f32.gmra.mrb[0].mxu0 %v998
  %v1066 = vpop.f32.mrb[0].mxu0
  %v1067 = vadd.f32 0.0, %v1066
  %v1068 = vpop.f32.mrb[0].mxu0
  %1069 = vdwg.mxu0
  %v1070 = vmul.f32 %v1067, 0.01
  %v1071 = vmax.f32 %v1067, %v1070
  %s1072 = scalar_lea.vmem %s2, 512
  %v1073 = vld [vmem:[%s1072] sm:$0xff]
  %v1074 = vld [vmem:[%s1072 + $0x8] sm:$0xff]
  %v1075 = vld [vmem:[%s1072 + $0x10] sm:$0xff]
  %v1076 = vld [vmem:[%s1072 + $0x18] sm:$0xff]
  %v1077 = vld [vmem:[%s1072 + $0x20] sm:$0xff]
  %v1078 = vld [vmem:[%s1072 + $0x28] sm:$0xff]
  %v1079 = vld [vmem:[%s1072 + $0x30] sm:$0xff]
  %v1080 = vld [vmem:[%s1072 + $0x38] sm:$0xff]
  %v1081 = vld [vmem:[%s1072 + $0x40] sm:$0xff]
  %v1082 = vld [vmem:[%s1072 + $0x48] sm:$0xff]
  %v1083 = vld [vmem:[%s1072 + $0x50] sm:$0xff]
  %v1084 = vld [vmem:[%s1072 + $0x58] sm:$0xff]
  %v1085 = vld [vmem:[%s1072 + $0x60] sm:$0xff]
  %v1086 = vld [vmem:[%s1072 + $0x68] sm:$0xff]
  %v1087 = vld [vmem:[%s1072 + $0x70] sm:$0xff]
  %v1088 = vld [vmem:[%s1072 + $0x78] sm:$0xff]
  %s1089 = scalar_lea.vmem %s3, 8
  %v1090 = vld [vmem:[%s1089] sm:$0x1]
  %v1091 = vlaneseq
  %v1092 = vshrl.u32 %v1091, 7
  %v1093 = vsub.s32 0, %v1092
  %v1094 = vrot.slane %v1090, %v1093
  %1095 = vmatprep.subr.mxu0 0.0
  %1096 = vmatpush1.msra.mxu0 %v1073
  %1097 = vmatprep.subr.mxu0 0.0
  %1098 = vmatpush1.msra.mxu0 %v1074
  %1099 = vmatprep.subr.mxu0 0.0
  %1100 = vmatpush1.msra.mxu0 %v1075
  %1101 = vmatprep.subr.mxu0 0.0
  %1102 = vmatpush1.msra.mxu0 %v1076
  %1103 = vmatprep.subr.mxu0 0.0
  %1104 = vmatpush1.msra.mxu0 %v1077
  %1105 = vmatprep.subr.mxu0 0.0
  %1106 = vmatpush1.msra.mxu0 %v1078
  %1107 = vmatprep.subr.mxu0 0.0
  %1108 = vmatpush1.msra.mxu0 %v1079
  %1109 = vmatprep.subr.mxu0 0.0
  %1110 = vmatpush1.msra.mxu0 %v1080
  %1111 = vmatprep.subr.mxu0 0.0
  %1112 = vmatpush1.msra.mxu0 %v1081
  %1113 = vmatprep.subr.mxu0 0.0
  %1114 = vmatpush1.msra.mxu0 %v1082
  %1115 = vmatprep.subr.mxu0 0.0
  %1116 = vmatpush1.msra.mxu0 %v1083
  %1117 = vmatprep.subr.mxu0 0.0
  %1118 = vmatpush1.msra.mxu0 %v1084
  %1119 = vmatprep.subr.mxu0 0.0
  %1120 = vmatpush1.msra.mxu0 %v1085
  %1121 = vmatprep.subr.mxu0 0.0
  %1122 = vmatpush1.msra.mxu0 %v1086
  %1123 = vmatprep.subr.mxu0 0.0
  %1124 = vmatpush1.msra.mxu0 %v1087
  %1125 = vmatprep.subr.mxu0 0.0
  %1126 = vmatpush1.msra.mxu0 %v1088
  %1127 = vmatprep.subr.mxu0 0.0
  %1128 = vmatpush1.msra.mxu0 0.0
  %1129 = vmatprep.subr.mxu0 0.0
  %1130 = vmatpush1.msra.mxu0 0.0
  %1131 = vmatprep.subr.mxu0 0.0
  %1132 = vmatpush1.msra.mxu0 0.0
  %1133 = vmatprep.subr.mxu0 0.0
  %1134 = vmatpush1.msra.mxu0 0.0
  %1135 = vmatprep.subr.mxu0 0.0
  %1136 = vmatpush1.msra.mxu0 0.0
  %1137 = vmatprep.subr.mxu0 0.0
  %1138 = vmatpush1.msra.mxu0 0.0
  %1139 = vmatprep.subr.mxu0 0.0
  %1140 = vmatpush1.msra.mxu0 0.0
  %1141 = vmatprep.subr.mxu0 0.0
  %1142 = vmatpush1.msra.mxu0 0.0
  %1143 = vmatprep.subr.mxu0 0.0
  %1144 = vmatpush1.msra.mxu0 0.0
  %1145 = vmatprep.subr.mxu0 0.0
  %1146 = vmatpush1.msra.mxu0 0.0
  %1147 = vmatprep.subr.mxu0 0.0
  %1148 = vmatpush1.msra.mxu0 0.0
  %1149 = vmatprep.subr.mxu0 0.0
  %1150 = vmatpush1.msra.mxu0 0.0
  %1151 = vmatprep.subr.mxu0 0.0
  %1152 = vmatpush1.msra.mxu0 0.0
  %1153 = vmatprep.subr.mxu0 0.0
  %1154 = vmatpush1.msra.mxu0 0.0
  %1155 = vmatprep.subr.mxu0 0.0
  %1156 = vmatpush1.msra.mxu0 0.0
  %1157 = vmatprep.subr.mxu0 0.0
  %1158 = vmatpush1.msra.mxu0 0.0
  %1159 = vmatprep.mubr.f32.mxu0 0.0
  %1160 = vmatmul.mubr.f32.gmra.mrb[0].mxu0 %v1071
  %v1161 = vpop.f32.mrb[0].mxu0
  %v1162 = vadd.f32 %v1094, %v1161
  %v1163 = vpop.f32.mrb[0].mxu0
  %1164 = vdwg.mxu0
  %v1165 = vmul.f32 %v1162, 0.01
  %v1166 = vmax.f32 %v1162, %v1165
  %s1167 = scalar_lea.vmem %s2, 640
  %v1168 = vld [vmem:[%s1167] sm:$0xff]
  %v1169 = vld [vmem:[%s1167 + $0x8] sm:$0xff]
  %v1170 = vld [vmem:[%s1167 + $0x10] sm:$0xff]
  %v1171 = vld [vmem:[%s1167 + $0x18] sm:$0xff]
  %v1172 = vld [vmem:[%s1167 + $0x20] sm:$0xff]
  %v1173 = vld [vmem:[%s1167 + $0x28] sm:$0xff]
  %v1174 = vld [vmem:[%s1167 + $0x30] sm:$0xff]
  %v1175 = vld [vmem:[%s1167 + $0x38] sm:$0xff]
  %v1176 = vld [vmem:[%s1167 + $0x40] sm:$0xff]
  %v1177 = vld [vmem:[%s1167 + $0x48] sm:$0xff]
  %v1178 = vld [vmem:[%s1167 + $0x50] sm:$0xff]
  %v1179 = vld [vmem:[%s1167 + $0x58] sm:$0xff]
  %v1180 = vld [vmem:[%s1167 + $0x60] sm:$0xff]
  %v1181 = vld [vmem:[%s1167 + $0x68] sm:$0xff]
  %v1182 = vld [vmem:[%s1167 + $0x70] sm:$0xff]
  %v1183 = vld [vmem:[%s1167 + $0x78] sm:$0xff]
  %v1184 = vld [vmem:[%s1089 + $0x1] sm:$0x1]
  %v1185 = vlaneseq
  %v1186 = vshrl.u32 %v1185, 7
  %v1187 = vsub.s32 0, %v1186
  %v1188 = vrot.slane %v1184, %v1187
  %1189 = vmatprep.subr.mxu0 0.0
  %1190 = vmatpush1.msra.mxu0 %v1168
  %1191 = vmatprep.subr.mxu0 0.0
  %1192 = vmatpush1.msra.mxu0 %v1169
  %1193 = vmatprep.subr.mxu0 0.0
  %1194 = vmatpush1.msra.mxu0 %v1170
  %1195 = vmatprep.subr.mxu0 0.0
  %1196 = vmatpush1.msra.mxu0 %v1171
  %1197 = vmatprep.subr.mxu0 0.0
  %1198 = vmatpush1.msra.mxu0 %v1172
  %1199 = vmatprep.subr.mxu0 0.0
  %1200 = vmatpush1.msra.mxu0 %v1173
  %1201 = vmatprep.subr.mxu0 0.0
  %1202 = vmatpush1.msra.mxu0 %v1174
  %1203 = vmatprep.subr.mxu0 0.0
  %1204 = vmatpush1.msra.mxu0 %v1175
  %1205 = vmatprep.subr.mxu0 0.0
  %1206 = vmatpush1.msra.mxu0 %v1176
  %1207 = vmatprep.subr.mxu0 0.0
  %1208 = vmatpush1.msra.mxu0 %v1177
  %1209 = vmatprep.subr.mxu0 0.0
  %1210 = vmatpush1.msra.mxu0 %v1178
  %1211 = vmatprep.subr.mxu0 0.0
  %1212 = vmatpush1.msra.mxu0 %v1179
  %1213 = vmatprep.subr.mxu0 0.0
  %1214 = vmatpush1.msra.mxu0 %v1180
  %1215 = vmatprep.subr.mxu0 0.0
  %1216 = vmatpush1.msra.mxu0 %v1181
  %1217 = vmatprep.subr.mxu0 0.0
  %1218 = vmatpush1.msra.mxu0 %v1182
  %1219 = vmatprep.subr.mxu0 0.0
  %1220 = vmatpush1.msra.mxu0 %v1183
  %1221 = vmatprep.subr.mxu0 0.0
  %1222 = vmatpush1.msra.mxu0 0.0
  %1223 = vmatprep.subr.mxu0 0.0
  %1224 = vmatpush1.msra.mxu0 0.0
  %1225 = vmatprep.subr.mxu0 0.0
  %1226 = vmatpush1.msra.mxu0 0.0
  %1227 = vmatprep.subr.mxu0 0.0
  %1228 = vmatpush1.msra.mxu0 0.0
  %1229 = vmatprep.subr.mxu0 0.0
  %1230 = vmatpush1.msra.mxu0 0.0
  %1231 = vmatprep.subr.mxu0 0.0
  %1232 = vmatpush1.msra.mxu0 0.0
  %1233 = vmatprep.subr.mxu0 0.0
  %1234 = vmatpush1.msra.mxu0 0.0
  %1235 = vmatprep.subr.mxu0 0.0
  %1236 = vmatpush1.msra.mxu0 0.0
  %1237 = vmatprep.subr.mxu0 0.0
  %1238 = vmatpush1.msra.mxu0 0.0
  %1239 = vmatprep.subr.mxu0 0.0
  %1240 = vmatpush1.msra.mxu0 0.0
  %1241 = vmatprep.subr.mxu0 0.0
  %1242 = vmatpush1.msra.mxu0 0.0
  %1243 = vmatprep.subr.mxu0 0.0
  %1244 = vmatpush1.msra.mxu0 0.0
  %1245 = vmatprep.subr.mxu0 0.0
  %1246 = vmatpush1.msra.mxu0 0.0
  %1247 = vmatprep.subr.mxu0 0.0
  %1248 = vmatpush1.msra.mxu0 0.0
  %1249 = vmatprep.subr.mxu0 0.0
  %1250 = vmatpush1.msra.mxu0 0.0
  %1251 = vmatprep.subr.mxu0 0.0
  %1252 = vmatpush1.msra.mxu0 0.0
  %1253 = vmatprep.mubr.f32.mxu0 0.0
  %1254 = vmatmul.mubr.f32.gmra.mrb[0].mxu0 %v1166
  %v1255 = vpop.f32.mrb[0].mxu0
  %v1256 = vadd.f32 %v1188, %v1255
  %v1257 = vpop.f32.mrb[0].mxu0
  %1258 = vdwg.mxu0
  %v1259 = vmul.f32 %v1256, 0.01
  %v1260 = vmax.f32 %v1256, %v1259
  %s1261 = scalar_lea.vmem %s4, 512
  %v1262 = vld [vmem:[%s1261] sm:$0xff]
  %v1263 = vld [vmem:[%s1261 + $0x8] sm:$0xff]
  %v1264 = vld [vmem:[%s1261 + $0x10] sm:$0xff]
  %v1265 = vld [vmem:[%s1261 + $0x18] sm:$0xff]
  %v1266 = vld [vmem:[%s1261 + $0x20] sm:$0xff]
  %v1267 = vld [vmem:[%s1261 + $0x28] sm:$0xff]
  %v1268 = vld [vmem:[%s1261 + $0x30] sm:$0xff]
  %v1269 = vld [vmem:[%s1261 + $0x38] sm:$0xff]
  %v1270 = vld [vmem:[%s1261 + $0x40] sm:$0xff]
  %v1271 = vld [vmem:[%s1261 + $0x48] sm:$0xff]
  %v1272 = vld [vmem:[%s1261 + $0x50] sm:$0xff]
  %v1273 = vld [vmem:[%s1261 + $0x58] sm:$0xff]
  %v1274 = vld [vmem:[%s1261 + $0x60] sm:$0xff]
  %v1275 = vld [vmem:[%s1261 + $0x68] sm:$0xff]
  %v1276 = vld [vmem:[%s1261 + $0x70] sm:$0xff]
  %v1277 = vld [vmem:[%s1261 + $0x78] sm:$0xff]
  %v1278 = vld [vmem:[%s1089 + $0x2] sm:$0x1]
  %v1279 = vlaneseq
  %v1280 = vshrl.u32 %v1279, 7
  %v1281 = vsub.s32 0, %v1280
  %v1282 = vrot.slane %v1278, %v1281
  %1283 = vmatprep.subr.mxu0 0.0
  %1284 = vmatpush1.msra.mxu0 %v1262
  %1285 = vmatprep.subr.mxu0 0.0
  %1286 = vmatpush1.msra.mxu0 %v1263
  %1287 = vmatprep.subr.mxu0 0.0
  %1288 = vmatpush1.msra.mxu0 %v1264
  %1289 = vmatprep.subr.mxu0 0.0
  %1290 = vmatpush1.msra.mxu0 %v1265
  %1291 = vmatprep.subr.mxu0 0.0
  %1292 = vmatpush1.msra.mxu0 %v1266
  %1293 = vmatprep.subr.mxu0 0.0
  %1294 = vmatpush1.msra.mxu0 %v1267
  %1295 = vmatprep.subr.mxu0 0.0
  %1296 = vmatpush1.msra.mxu0 %v1268
  %1297 = vmatprep.subr.mxu0 0.0
  %1298 = vmatpush1.msra.mxu0 %v1269
  %1299 = vmatprep.subr.mxu0 0.0
  %1300 = vmatpush1.msra.mxu0 %v1270
  %1301 = vmatprep.subr.mxu0 0.0
  %1302 = vmatpush1.msra.mxu0 %v1271
  %1303 = vmatprep.subr.mxu0 0.0
  %1304 = vmatpush1.msra.mxu0 %v1272
  %1305 = vmatprep.subr.mxu0 0.0
  %1306 = vmatpush1.msra.mxu0 %v1273
  %1307 = vmatprep.subr.mxu0 0.0
  %1308 = vmatpush1.msra.mxu0 %v1274
  %1309 = vmatprep.subr.mxu0 0.0
  %1310 = vmatpush1.msra.mxu0 %v1275
  %1311 = vmatprep.subr.mxu0 0.0
  %1312 = vmatpush1.msra.mxu0 %v1276
  %1313 = vmatprep.subr.mxu0 0.0
  %1314 = vmatpush1.msra.mxu0 %v1277
  %1315 = vmatprep.subr.mxu0 0.0
  %1316 = vmatpush1.msra.mxu0 0.0
  %1317 = vmatprep.subr.mxu0 0.0
  %1318 = vmatpush1.msra.mxu0 0.0
  %1319 = vmatprep.subr.mxu0 0.0
  %1320 = vmatpush1.msra.mxu0 0.0
  %1321 = vmatprep.subr.mxu0 0.0
  %1322 = vmatpush1.msra.mxu0 0.0
  %1323 = vmatprep.subr.mxu0 0.0
  %1324 = vmatpush1.msra.mxu0 0.0
  %1325 = vmatprep.subr.mxu0 0.0
  %1326 = vmatpush1.msra.mxu0 0.0
  %1327 = vmatprep.subr.mxu0 0.0
  %1328 = vmatpush1.msra.mxu0 0.0
  %1329 = vmatprep.subr.mxu0 0.0
  %1330 = vmatpush1.msra.mxu0 0.0
  %1331 = vmatprep.subr.mxu0 0.0
  %1332 = vmatpush1.msra.mxu0 0.0
  %1333 = vmatprep.subr.mxu0 0.0
  %1334 = vmatpush1.msra.mxu0 0.0
  %1335 = vmatprep.subr.mxu0 0.0
  %1336 = vmatpush1.msra.mxu0 0.0
  %1337 = vmatprep.subr.mxu0 0.0
  %1338 = vmatpush1.msra.mxu0 0.0
  %1339 = vmatprep.subr.mxu0 0.0
  %1340 = vmatpush1.msra.mxu0 0.0
  %1341 = vmatprep.subr.mxu0 0.0
  %1342 = vmatpush1.msra.mxu0 0.0
  %1343 = vmatprep.subr.mxu0 0.0
  %1344 = vmatpush1.msra.mxu0 0.0
  %1345 = vmatprep.subr.mxu0 0.0
  %1346 = vmatpush1.msra.mxu0 0.0
  %1347 = vmatprep.mubr.f32.mxu0 0.0
  %1348 = vmatmul.mubr.f32.gmra.mrb[0].mxu0 %v1260
  %v1349 = vpop.f32.mrb[0].mxu0
  %v1350 = vadd.f32 %v1282, %v1349
  %v1351 = vpop.f32.mrb[0].mxu0
  %1352 = vdwg.mxu0
  %s1353 = scalar_lea.vmem %s4, 640
  %v1354 = vld [vmem:[%s1353] sm:$0xff]
  %v1355 = vld [vmem:[%s1353 + $0x8] sm:$0xff]
  %v1356 = vld [vmem:[%s1353 + $0x10] sm:$0xff]
  %v1357 = vld [vmem:[%s1353 + $0x18] sm:$0xff]
  %v1358 = vld [vmem:[%s1353 + $0x20] sm:$0xff]
  %v1359 = vld [vmem:[%s1353 + $0x28] sm:$0xff]
  %v1360 = vld [vmem:[%s1353 + $0x30] sm:$0xff]
  %v1361 = vld [vmem:[%s1353 + $0x38] sm:$0xff]
  %v1362 = vld [vmem:[%s1353 + $0x40] sm:$0xff]
  %v1363 = vld [vmem:[%s1353 + $0x48] sm:$0xff]
  %v1364 = vld [vmem:[%s1353 + $0x50] sm:$0xff]
  %v1365 = vld [vmem:[%s1353 + $0x58] sm:$0xff]
  %v1366 = vld [vmem:[%s1353 + $0x60] sm:$0xff]
  %v1367 = vld [vmem:[%s1353 + $0x68] sm:$0xff]
  %v1368 = vld [vmem:[%s1353 + $0x70] sm:$0xff]
  %v1369 = vld [vmem:[%s1353 + $0x78] sm:$0xff]
  %v1370 = vld [vmem:[%s1089 + $0x3] sm:$0x1]
  %v1371 = vlaneseq
  %v1372 = vshrl.u32 %v1371, 7
  %v1373 = vsub.s32 0, %v1372
  %v1374 = vrot.slane %v1370, %v1373
  %1375 = vmatprep.subr.mxu0 0.0
  %1376 = vmatpush1.msra.mxu0 %v1354
  %1377 = vmatprep.subr.mxu0 0.0
  %1378 = vmatpush1.msra.mxu0 %v1355
  %1379 = vmatprep.subr.mxu0 0.0
  %1380 = vmatpush1.msra.mxu0 %v1356
  %1381 = vmatprep.subr.mxu0 0.0
  %1382 = vmatpush1.msra.mxu0 %v1357
  %1383 = vmatprep.subr.mxu0 0.0
  %1384 = vmatpush1.msra.mxu0 %v1358
  %1385 = vmatprep.subr.mxu0 0.0
  %1386 = vmatpush1.msra.mxu0 %v1359
  %1387 = vmatprep.subr.mxu0 0.0
  %1388 = vmatpush1.msra.mxu0 %v1360
  %1389 = vmatprep.subr.mxu0 0.0
  %1390 = vmatpush1.msra.mxu0 %v1361
  %1391 = vmatprep.subr.mxu0 0.0
  %1392 = vmatpush1.msra.mxu0 %v1362
  %1393 = vmatprep.subr.mxu0 0.0
  %1394 = vmatpush1.msra.mxu0 %v1363
  %1395 = vmatprep.subr.mxu0 0.0
  %1396 = vmatpush1.msra.mxu0 %v1364
  %1397 = vmatprep.subr.mxu0 0.0
  %1398 = vmatpush1.msra.mxu0 %v1365
  %1399 = vmatprep.subr.mxu0 0.0
  %1400 = vmatpush1.msra.mxu0 %v1366
  %1401 = vmatprep.subr.mxu0 0.0
  %1402 = vmatpush1.msra.mxu0 %v1367
  %1403 = vmatprep.subr.mxu0 0.0
  %1404 = vmatpush1.msra.mxu0 %v1368
  %1405 = vmatprep.subr.mxu0 0.0
  %1406 = vmatpush1.msra.mxu0 %v1369
  %1407 = vmatprep.subr.mxu0 0.0
  %1408 = vmatpush1.msra.mxu0 0.0
  %1409 = vmatprep.subr.mxu0 0.0
  %1410 = vmatpush1.msra.mxu0 0.0
  %1411 = vmatprep.subr.mxu0 0.0
  %1412 = vmatpush1.msra.mxu0 0.0
  %1413 = vmatprep.subr.mxu0 0.0
  %1414 = vmatpush1.msra.mxu0 0.0
  %1415 = vmatprep.subr.mxu0 0.0
  %1416 = vmatpush1.msra.mxu0 0.0
  %1417 = vmatprep.subr.mxu0 0.0
  %1418 = vmatpush1.msra.mxu0 0.0
  %1419 = vmatprep.subr.mxu0 0.0
  %1420 = vmatpush1.msra.mxu0 0.0
  %1421 = vmatprep.subr.mxu0 0.0
  %1422 = vmatpush1.msra.mxu0 0.0
  %1423 = vmatprep.subr.mxu0 0.0
  %1424 = vmatpush1.msra.mxu0 0.0
  %1425 = vmatprep.subr.mxu0 0.0
  %1426 = vmatpush1.msra.mxu0 0.0
  %1427 = vmatprep.subr.mxu0 0.0
  %1428 = vmatpush1.msra.mxu0 0.0
  %1429 = vmatprep.subr.mxu0 0.0
  %1430 = vmatpush1.msra.mxu0 0.0
  %1431 = vmatprep.subr.mxu0 0.0
  %1432 = vmatpush1.msra.mxu0 0.0
  %1433 = vmatprep.subr.mxu0 0.0
  %1434 = vmatpush1.msra.mxu0 0.0
  %1435 = vmatprep.subr.mxu0 0.0
  %1436 = vmatpush1.msra.mxu0 0.0
  %1437 = vmatprep.subr.mxu0 0.0
  %1438 = vmatpush1.msra.mxu0 0.0
  %1439 = vmatprep.mubr.f32.mxu0 0.0
  %1440 = vmatmul.mubr.f32.gmra.mrb[0].mxu0 %v1260
  %v1441 = vpop.f32.mrb[0].mxu0
  %v1442 = vadd.f32 %v1374, %v1441
  %v1443 = vpop.f32.mrb[0].mxu0
  %1444 = vdwg.mxu0
  %v1445 = vand.u32 2147483647, %v1350
  %vm1446 = vcmp.gt.f32.partialorder %v1445, 2.4142137
  %vm1447 = vcmp.gt.f32.partialorder %v1445, 0.41421357
  %vm1448 = vmxor %vm1446, 1
  %vm1449 = vmand %vm1447, %vm1448
  %v1450 = vadd.f32 %v1445, 1.0
  %v1451 = vsel %vm1446, %v1445, %v1450
  %v1452 = vrcp.pop %v1451
  %v1453 = vmul.f32 %v1451, %v1452
  %v1454 = vsub.f32 2.0, %v1453
  %v1455 = vmul.f32 %v1452, %v1454
  %v1456 = vsub.f32 0.0, %v1455
  %v1457 = vsub.f32 %v1445, 1.0
  %v1458 = vmul.f32 %v1457, %v1455
  %v1459 = vsel %vm1449, %v1458, %v1445
  %v1460 = vsel %vm1446, %v1456, %v1459
  %v1461 = vsel %vm1449, 0.49951324, 0.0
  %v1462 = vsel %vm1446, 0.9990265, %v1461
  %v1463 = vmul.f32 %v1460, %v1460
  %v1464 = vmul.f32 %v1463, 0.051221814
  %v1465 = vadd.f32 %v1464, -0.08826208
  %v1466 = vmul.f32 %v1465, %v1463
  %v1467 = vadd.f32 %v1466, 0.12705824
  %v1468 = vmul.f32 %v1467, %v1463
  %v1469 = vadd.f32 %v1468, -0.21199755
  %v1470 = vmul.f32 %v1469, %v1463
  %v1471 = vadd.f32 %v1470, 0.636
  %v1472 = vmul.f32 %v1471, %v1460
  %v1473 = vadd.f32 %v1462, %v1472
  %vm1474 = vcmp.lt.f32.partialorder %v1350, 0.0
  %v1475 = vsub.f32 0.0, %v1473
  %v1476 = vsel %vm1474, %v1475, %v1473
  %v1477 = vmul.f32 %v1476, 1.442695
  %v1478 = vpow.pop %v1477
  %v1479 = vmul.f32 %v1478, %v992
  %v1480 = vadd.f32 %v1479, %v1442
  %v1481 = vadd.f32 %v993, %v1476
  %s1482 = scalar_lea.vmem %s1, 48
  %v1483 = vld [vmem:[%s1482] sm:$0xff]
  %v1484 = vld [vmem:[%s1482 + $0x8] sm:$0xff]
  %v1486 = vsel %vm23, %v1480, 0
  %1488 = vmatprep.subr.mxu0 0.0
  %1489 = vmatpush1.msra.mxu0 %v1483
  %1490 = vmatprep.subr.mxu0 0.0
  %1491 = vmatpush1.msra.mxu0 %v1484
  %1492 = vmatprep.subr.mxu0 0.0
  %1493 = vmatpush1.msra.mxu0 0.0
  %1494 = vmatprep.subr.mxu0 0.0
  %1495 = vmatpush1.msra.mxu0 0.0
  %1496 = vmatprep.subr.mxu0 0.0
  %1497 = vmatpush1.msra.mxu0 0.0
  %1498 = vmatprep.subr.mxu0 0.0
  %1499 = vmatpush1.msra.mxu0 0.0
  %1500 = vmatprep.subr.mxu0 0.0
  %1501 = vmatpush1.msra.mxu0 0.0
  %1502 = vmatprep.subr.mxu0 0.0
  %1503 = vmatpush1.msra.mxu0 0.0
  %1504 = vmatprep.subr.mxu0 0.0
  %1505 = vmatpush1.msra.mxu0 0.0
  %1506 = vmatprep.subr.mxu0 0.0
  %1507 = vmatpush1.msra.mxu0 0.0
  %1508 = vmatprep.subr.mxu0 0.0
  %1509 = vmatpush1.msra.mxu0 0.0
  %1510 = vmatprep.subr.mxu0 0.0
  %1511 = vmatpush1.msra.mxu0 0.0
  %1512 = vmatprep.subr.mxu0 0.0
  %1513 = vmatpush1.msra.mxu0 0.0
  %1514 = vmatprep.subr.mxu0 0.0
  %1515 = vmatpush1.msra.mxu0 0.0
  %1516 = vmatprep.subr.mxu0 0.0
  %1517 = vmatpush1.msra.mxu0 0.0
  %1518 = vmatprep.subr.mxu0 0.0
  %1519 = vmatpush1.msra.mxu0 0.0
  %1520 = vmatprep.subr.mxu0 0.0
  %1521 = vmatpush1.msra.mxu0 0.0
  %1522 = vmatprep.subr.mxu0 0.0
  %1523 = vmatpush1.msra.mxu0 0.0
  %1524 = vmatprep.subr.mxu0 0.0
  %1525 = vmatpush1.msra.mxu0 0.0
  %1526 = vmatprep.subr.mxu0 0.0
  %1527 = vmatpush1.msra.mxu0 0.0
  %1528 = vmatprep.subr.mxu0 0.0
  %1529 = vmatpush1.msra.mxu0 0.0
  %1530 = vmatprep.subr.mxu0 0.0
  %1531 = vmatpush1.msra.mxu0 0.0
  %1532 = vmatprep.subr.mxu0 0.0
  %1533 = vmatpush1.msra.mxu0 0.0
  %1534 = vmatprep.subr.mxu0 0.0
  %1535 = vmatpush1.msra.mxu0 0.0
  %1536 = vmatprep.subr.mxu0 0.0
  %1537 = vmatpush1.msra.mxu0 0.0
  %1538 = vmatprep.subr.mxu0 0.0
  %1539 = vmatpush1.msra.mxu0 0.0
  %1540 = vmatprep.subr.mxu0 0.0
  %1541 = vmatpush1.msra.mxu0 0.0
  %1542 = vmatprep.subr.mxu0 0.0
  %1543 = vmatpush1.msra.mxu0 0.0
  %1544 = vmatprep.subr.mxu0 0.0
  %1545 = vmatpush1.msra.mxu0 0.0
  %1546 = vmatprep.subr.mxu0 0.0
  %1547 = vmatpush1.msra.mxu0 0.0
  %1548 = vmatprep.subr.mxu0 0.0
  %1549 = vmatpush1.msra.mxu0 0.0
  %1550 = vmatprep.subr.mxu0 0.0
  %1551 = vmatpush1.msra.mxu0 0.0
  %1552 = vmatprep.mubr.f32.mxu0 0.0
  %1553 = vmatmul.mubr.f32.gmra.mrb[0].mxu0 %v1486
  %v1554 = vpop.f32.mrb[0].mxu0
  %v1555 = vadd.f32 0.0, %v1554
  %v1556 = vpop.f32.mrb[0].mxu0
  %1557 = vdwg.mxu0
  %v1558 = vmul.f32 %v1555, 0.01
  %v1559 = vmax.f32 %v1555, %v1558
  %s1560 = scalar_lea.vmem %s2, 768
  %v1561 = vld [vmem:[%s1560] sm:$0xff]
  %v1562 = vld [vmem:[%s1560 + $0x8] sm:$0xff]
  %v1563 = vld [vmem:[%s1560 + $0x10] sm:$0xff]
  %v1564 = vld [vmem:[%s1560 + $0x18] sm:$0xff]
  %v1565 = vld [vmem:[%s1560 + $0x20] sm:$0xff]
  %v1566 = vld [vmem:[%s1560 + $0x28] sm:$0xff]
  %v1567 = vld [vmem:[%s1560 + $0x30] sm:$0xff]
  %v1568 = vld [vmem:[%s1560 + $0x38] sm:$0xff]
  %v1569 = vld [vmem:[%s1560 + $0x40] sm:$0xff]
  %v1570 = vld [vmem:[%s1560 + $0x48] sm:$0xff]
  %v1571 = vld [vmem:[%s1560 + $0x50] sm:$0xff]
  %v1572 = vld [vmem:[%s1560 + $0x58] sm:$0xff]
  %v1573 = vld [vmem:[%s1560 + $0x60] sm:$0xff]
  %v1574 = vld [vmem:[%s1560 + $0x68] sm:$0xff]
  %v1575 = vld [vmem:[%s1560 + $0x70] sm:$0xff]
  %v1576 = vld [vmem:[%s1560 + $0x78] sm:$0xff]
  %s1577 = scalar_lea.vmem %s3, 12
  %v1578 = vld [vmem:[%s1577] sm:$0x1]
  %v1579 = vlaneseq
  %v1580 = vshrl.u32 %v1579, 7
  %v1581 = vsub.s32 0, %v1580
  %v1582 = vrot.slane %v1578, %v1581
  %1583 = vmatprep.subr.mxu0 0.0
  %1584 = vmatpush1.msra.mxu0 %v1561
  %1585 = vmatprep.subr.mxu0 0.0
  %1586 = vmatpush1.msra.mxu0 %v1562
  %1587 = vmatprep.subr.mxu0 0.0
  %1588 = vmatpush1.msra.mxu0 %v1563
  %1589 = vmatprep.subr.mxu0 0.0
  %1590 = vmatpush1.msra.mxu0 %v1564
  %1591 = vmatprep.subr.mxu0 0.0
  %1592 = vmatpush1.msra.mxu0 %v1565
  %1593 = vmatprep.subr.mxu0 0.0
  %1594 = vmatpush1.msra.mxu0 %v1566
  %1595 = vmatprep.subr.mxu0 0.0
  %1596 = vmatpush1.msra.mxu0 %v1567
  %1597 = vmatprep.subr.mxu0 0.0
  %1598 = vmatpush1.msra.mxu0 %v1568
  %1599 = vmatprep.subr.mxu0 0.0
  %1600 = vmatpush1.msra.mxu0 %v1569
  %1601 = vmatprep.subr.mxu0 0.0
  %1602 = vmatpush1.msra.mxu0 %v1570
  %1603 = vmatprep.subr.mxu0 0.0
  %1604 = vmatpush1.msra.mxu0 %v1571
  %1605 = vmatprep.subr.mxu0 0.0
  %1606 = vmatpush1.msra.mxu0 %v1572
  %1607 = vmatprep.subr.mxu0 0.0
  %1608 = vmatpush1.msra.mxu0 %v1573
  %1609 = vmatprep.subr.mxu0 0.0
  %1610 = vmatpush1.msra.mxu0 %v1574
  %1611 = vmatprep.subr.mxu0 0.0
  %1612 = vmatpush1.msra.mxu0 %v1575
  %1613 = vmatprep.subr.mxu0 0.0
  %1614 = vmatpush1.msra.mxu0 %v1576
  %1615 = vmatprep.subr.mxu0 0.0
  %1616 = vmatpush1.msra.mxu0 0.0
  %1617 = vmatprep.subr.mxu0 0.0
  %1618 = vmatpush1.msra.mxu0 0.0
  %1619 = vmatprep.subr.mxu0 0.0
  %1620 = vmatpush1.msra.mxu0 0.0
  %1621 = vmatprep.subr.mxu0 0.0
  %1622 = vmatpush1.msra.mxu0 0.0
  %1623 = vmatprep.subr.mxu0 0.0
  %1624 = vmatpush1.msra.mxu0 0.0
  %1625 = vmatprep.subr.mxu0 0.0
  %1626 = vmatpush1.msra.mxu0 0.0
  %1627 = vmatprep.subr.mxu0 0.0
  %1628 = vmatpush1.msra.mxu0 0.0
  %1629 = vmatprep.subr.mxu0 0.0
  %1630 = vmatpush1.msra.mxu0 0.0
  %1631 = vmatprep.subr.mxu0 0.0
  %1632 = vmatpush1.msra.mxu0 0.0
  %1633 = vmatprep.subr.mxu0 0.0
  %1634 = vmatpush1.msra.mxu0 0.0
  %1635 = vmatprep.subr.mxu0 0.0
  %1636 = vmatpush1.msra.mxu0 0.0
  %1637 = vmatprep.subr.mxu0 0.0
  %1638 = vmatpush1.msra.mxu0 0.0
  %1639 = vmatprep.subr.mxu0 0.0
  %1640 = vmatpush1.msra.mxu0 0.0
  %1641 = vmatprep.subr.mxu0 0.0
  %1642 = vmatpush1.msra.mxu0 0.0
  %1643 = vmatprep.subr.mxu0 0.0
  %1644 = vmatpush1.msra.mxu0 0.0
  %1645 = vmatprep.subr.mxu0 0.0
  %1646 = vmatpush1.msra.mxu0 0.0
  %1647 = vmatprep.mubr.f32.mxu0 0.0
  %1648 = vmatmul.mubr.f32.gmra.mrb[0].mxu0 %v1559
  %v1649 = vpop.f32.mrb[0].mxu0
  %v1650 = vadd.f32 %v1582, %v1649
  %v1651 = vpop.f32.mrb[0].mxu0
  %1652 = vdwg.mxu0
  %v1653 = vmul.f32 %v1650, 0.01
  %v1654 = vmax.f32 %v1650, %v1653
  %s1655 = scalar_lea.vmem %s2, 896
  %v1656 = vld [vmem:[%s1655] sm:$0xff]
  %v1657 = vld [vmem:[%s1655 + $0x8] sm:$0xff]
  %v1658 = vld [vmem:[%s1655 + $0x10] sm:$0xff]
  %v1659 = vld [vmem:[%s1655 + $0x18] sm:$0xff]
  %v1660 = vld [vmem:[%s1655 + $0x20] sm:$0xff]
  %v1661 = vld [vmem:[%s1655 + $0x28] sm:$0xff]
  %v1662 = vld [vmem:[%s1655 + $0x30] sm:$0xff]
  %v1663 = vld [vmem:[%s1655 + $0x38] sm:$0xff]
  %v1664 = vld [vmem:[%s1655 + $0x40] sm:$0xff]
  %v1665 = vld [vmem:[%s1655 + $0x48] sm:$0xff]
  %v1666 = vld [vmem:[%s1655 + $0x50] sm:$0xff]
  %v1667 = vld [vmem:[%s1655 + $0x58] sm:$0xff]
  %v1668 = vld [vmem:[%s1655 + $0x60] sm:$0xff]
  %v1669 = vld [vmem:[%s1655 + $0x68] sm:$0xff]
  %v1670 = vld [vmem:[%s1655 + $0x70] sm:$0xff]
  %v1671 = vld [vmem:[%s1655 + $0x78] sm:$0xff]
  %v1672 = vld [vmem:[%s1577 + $0x1] sm:$0x1]
  %v1673 = vlaneseq
  %v1674 = vshrl.u32 %v1673, 7
  %v1675 = vsub.s32 0, %v1674
  %v1676 = vrot.slane %v1672, %v1675
  %1677 = vmatprep.subr.mxu0 0.0
  %1678 = vmatpush1.msra.mxu0 %v1656
  %1679 = vmatprep.subr.mxu0 0.0
  %1680 = vmatpush1.msra.mxu0 %v1657
  %1681 = vmatprep.subr.mxu0 0.0
  %1682 = vmatpush1.msra.mxu0 %v1658
  %1683 = vmatprep.subr.mxu0 0.0
  %1684 = vmatpush1.msra.mxu0 %v1659
  %1685 = vmatprep.subr.mxu0 0.0
  %1686 = vmatpush1.msra.mxu0 %v1660
  %1687 = vmatprep.subr.mxu0 0.0
  %1688 = vmatpush1.msra.mxu0 %v1661
  %1689 = vmatprep.subr.mxu0 0.0
  %1690 = vmatpush1.msra.mxu0 %v1662
  %1691 = vmatprep.subr.mxu0 0.0
  %1692 = vmatpush1.msra.mxu0 %v1663
  %1693 = vmatprep.subr.mxu0 0.0
  %1694 = vmatpush1.msra.mxu0 %v1664
  %1695 = vmatprep.subr.mxu0 0.0
  %1696 = vmatpush1.msra.mxu0 %v1665
  %1697 = vmatprep.subr.mxu0 0.0
  %1698 = vmatpush1.msra.mxu0 %v1666
  %1699 = vmatprep.subr.mxu0 0.0
  %1700 = vmatpush1.msra.mxu0 %v1667
  %1701 = vmatprep.subr.mxu0 0.0
  %1702 = vmatpush1.msra.mxu0 %v1668
  %1703 = vmatprep.subr.mxu0 0.0
  %1704 = vmatpush1.msra.mxu0 %v1669
  %1705 = vmatprep.subr.mxu0 0.0
  %1706 = vmatpush1.msra.mxu0 %v1670
  %1707 = vmatprep.subr.mxu0 0.0
  %1708 = vmatpush1.msra.mxu0 %v1671
  %1709 = vmatprep.subr.mxu0 0.0
  %1710 = vmatpush1.msra.mxu0 0.0
  %1711 = vmatprep.subr.mxu0 0.0
  %1712 = vmatpush1.msra.mxu0 0.0
  %1713 = vmatprep.subr.mxu0 0.0
  %1714 = vmatpush1.msra.mxu0 0.0
  %1715 = vmatprep.subr.mxu0 0.0
  %1716 = vmatpush1.msra.mxu0 0.0
  %1717 = vmatprep.subr.mxu0 0.0
  %1718 = vmatpush1.msra.mxu0 0.0
  %1719 = vmatprep.subr.mxu0 0.0
  %1720 = vmatpush1.msra.mxu0 0.0
  %1721 = vmatprep.subr.mxu0 0.0
  %1722 = vmatpush1.msra.mxu0 0.0
  %1723 = vmatprep.subr.mxu0 0.0
  %1724 = vmatpush1.msra.mxu0 0.0
  %1725 = vmatprep.subr.mxu0 0.0
  %1726 = vmatpush1.msra.mxu0 0.0
  %1727 = vmatprep.subr.mxu0 0.0
  %1728 = vmatpush1.msra.mxu0 0.0
  %1729 = vmatprep.subr.mxu0 0.0
  %1730 = vmatpush1.msra.mxu0 0.0
  %1731 = vmatprep.subr.mxu0 0.0
  %1732 = vmatpush1.msra.mxu0 0.0
  %1733 = vmatprep.subr.mxu0 0.0
  %1734 = vmatpush1.msra.mxu0 0.0
  %1735 = vmatprep.subr.mxu0 0.0
  %1736 = vmatpush1.msra.mxu0 0.0
  %1737 = vmatprep.subr.mxu0 0.0
  %1738 = vmatpush1.msra.mxu0 0.0
  %1739 = vmatprep.subr.mxu0 0.0
  %1740 = vmatpush1.msra.mxu0 0.0
  %1741 = vmatprep.mubr.f32.mxu0 0.0
  %1742 = vmatmul.mubr.f32.gmra.mrb[0].mxu0 %v1654
  %v1743 = vpop.f32.mrb[0].mxu0
  %v1744 = vadd.f32 %v1676, %v1743
  %v1745 = vpop.f32.mrb[0].mxu0
  %1746 = vdwg.mxu0
  %v1747 = vmul.f32 %v1744, 0.01
  %v1748 = vmax.f32 %v1744, %v1747
  %s1749 = scalar_lea.vmem %s4, 768
  %v1750 = vld [vmem:[%s1749] sm:$0xff]
  %v1751 = vld [vmem:[%s1749 + $0x8] sm:$0xff]
  %v1752 = vld [vmem:[%s1749 + $0x10] sm:$0xff]
  %v1753 = vld [vmem:[%s1749 + $0x18] sm:$0xff]
  %v1754 = vld [vmem:[%s1749 + $0x20] sm:$0xff]
  %v1755 = vld [vmem:[%s1749 + $0x28] sm:$0xff]
  %v1756 = vld [vmem:[%s1749 + $0x30] sm:$0xff]
  %v1757 = vld [vmem:[%s1749 + $0x38] sm:$0xff]
  %v1758 = vld [vmem:[%s1749 + $0x40] sm:$0xff]
  %v1759 = vld [vmem:[%s1749 + $0x48] sm:$0xff]
  %v1760 = vld [vmem:[%s1749 + $0x50] sm:$0xff]
  %v1761 = vld [vmem:[%s1749 + $0x58] sm:$0xff]
  %v1762 = vld [vmem:[%s1749 + $0x60] sm:$0xff]
  %v1763 = vld [vmem:[%s1749 + $0x68] sm:$0xff]
  %v1764 = vld [vmem:[%s1749 + $0x70] sm:$0xff]
  %v1765 = vld [vmem:[%s1749 + $0x78] sm:$0xff]
  %v1766 = vld [vmem:[%s1577 + $0x2] sm:$0x1]
  %v1767 = vlaneseq
  %v1768 = vshrl.u32 %v1767, 7
  %v1769 = vsub.s32 0, %v1768
  %v1770 = vrot.slane %v1766, %v1769
  %1771 = vmatprep.subr.mxu0 0.0
  %1772 = vmatpush1.msra.mxu0 %v1750
  %1773 = vmatprep.subr.mxu0 0.0
  %1774 = vmatpush1.msra.mxu0 %v1751
  %1775 = vmatprep.subr.mxu0 0.0
  %1776 = vmatpush1.msra.mxu0 %v1752
  %1777 = vmatprep.subr.mxu0 0.0
  %1778 = vmatpush1.msra.mxu0 %v1753
  %1779 = vmatprep.subr.mxu0 0.0
  %1780 = vmatpush1.msra.mxu0 %v1754
  %1781 = vmatprep.subr.mxu0 0.0
  %1782 = vmatpush1.msra.mxu0 %v1755
  %1783 = vmatprep.subr.mxu0 0.0
  %1784 = vmatpush1.msra.mxu0 %v1756
  %1785 = vmatprep.subr.mxu0 0.0
  %1786 = vmatpush1.msra.mxu0 %v1757
  %1787 = vmatprep.subr.mxu0 0.0
  %1788 = vmatpush1.msra.mxu0 %v1758
  %1789 = vmatprep.subr.mxu0 0.0
  %1790 = vmatpush1.msra.mxu0 %v1759
  %1791 = vmatprep.subr.mxu0 0.0
  %1792 = vmatpush1.msra.mxu0 %v1760
  %1793 = vmatprep.subr.mxu0 0.0
  %1794 = vmatpush1.msra.mxu0 %v1761
  %1795 = vmatprep.subr.mxu0 0.0
  %1796 = vmatpush1.msra.mxu0 %v1762
  %1797 = vmatprep.subr.mxu0 0.0
  %1798 = vmatpush1.msra.mxu0 %v1763
  %1799 = vmatprep.subr.mxu0 0.0
  %1800 = vmatpush1.msra.mxu0 %v1764
  %1801 = vmatprep.subr.mxu0 0.0
  %1802 = vmatpush1.msra.mxu0 %v1765
  %1803 = vmatprep.subr.mxu0 0.0
  %1804 = vmatpush1.msra.mxu0 0.0
  %1805 = vmatprep.subr.mxu0 0.0
  %1806 = vmatpush1.msra.mxu0 0.0
  %1807 = vmatprep.subr.mxu0 0.0
  %1808 = vmatpush1.msra.mxu0 0.0
  %1809 = vmatprep.subr.mxu0 0.0
  %1810 = vmatpush1.msra.mxu0 0.0
  %1811 = vmatprep.subr.mxu0 0.0
  %1812 = vmatpush1.msra.mxu0 0.0
  %1813 = vmatprep.subr.mxu0 0.0
  %1814 = vmatpush1.msra.mxu0 0.0
  %1815 = vmatprep.subr.mxu0 0.0
  %1816 = vmatpush1.msra.mxu0 0.0
  %1817 = vmatprep.subr.mxu0 0.0
  %1818 = vmatpush1.msra.mxu0 0.0
  %1819 = vmatprep.subr.mxu0 0.0
  %1820 = vmatpush1.msra.mxu0 0.0
  %1821 = vmatprep.subr.mxu0 0.0
  %1822 = vmatpush1.msra.mxu0 0.0
  %1823 = vmatprep.subr.mxu0 0.0
  %1824 = vmatpush1.msra.mxu0 0.0
  %1825 = vmatprep.subr.mxu0 0.0
  %1826 = vmatpush1.msra.mxu0 0.0
  %1827 = vmatprep.subr.mxu0 0.0
  %1828 = vmatpush1.msra.mxu0 0.0
  %1829 = vmatprep.subr.mxu0 0.0
  %1830 = vmatpush1.msra.mxu0 0.0
  %1831 = vmatprep.subr.mxu0 0.0
  %1832 = vmatpush1.msra.mxu0 0.0
  %1833 = vmatprep.subr.mxu0 0.0
  %1834 = vmatpush1.msra.mxu0 0.0
  %1835 = vmatprep.mubr.f32.mxu0 0.0
  %1836 = vmatmul.mubr.f32.gmra.mrb[0].mxu0 %v1748
  %v1837 = vpop.f32.mrb[0].mxu0
  %v1838 = vadd.f32 %v1770, %v1837
  %v1839 = vpop.f32.mrb[0].mxu0
  %1840 = vdwg.mxu0
  %s1841 = scalar_lea.vmem %s4, 896
  %v1842 = vld [vmem:[%s1841] sm:$0xff]
  %v1843 = vld [vmem:[%s1841 + $0x8] sm:$0xff]
  %v1844 = vld [vmem:[%s1841 + $0x10] sm:$0xff]
  %v1845 = vld [vmem:[%s1841 + $0x18] sm:$0xff]
  %v1846 = vld [vmem:[%s1841 + $0x20] sm:$0xff]
  %v1847 = vld [vmem:[%s1841 + $0x28] sm:$0xff]
  %v1848 = vld [vmem:[%s1841 + $0x30] sm:$0xff]
  %v1849 = vld [vmem:[%s1841 + $0x38] sm:$0xff]
  %v1850 = vld [vmem:[%s1841 + $0x40] sm:$0xff]
  %v1851 = vld [vmem:[%s1841 + $0x48] sm:$0xff]
  %v1852 = vld [vmem:[%s1841 + $0x50] sm:$0xff]
  %v1853 = vld [vmem:[%s1841 + $0x58] sm:$0xff]
  %v1854 = vld [vmem:[%s1841 + $0x60] sm:$0xff]
  %v1855 = vld [vmem:[%s1841 + $0x68] sm:$0xff]
  %v1856 = vld [vmem:[%s1841 + $0x70] sm:$0xff]
  %v1857 = vld [vmem:[%s1841 + $0x78] sm:$0xff]
  %v1858 = vld [vmem:[%s1577 + $0x3] sm:$0x1]
  %v1859 = vlaneseq
  %v1860 = vshrl.u32 %v1859, 7
  %v1861 = vsub.s32 0, %v1860
  %v1862 = vrot.slane %v1858, %v1861
  %1863 = vmatprep.subr.mxu0 0.0
  %1864 = vmatpush1.msra.mxu0 %v1842
  %1865 = vmatprep.subr.mxu0 0.0
  %1866 = vmatpush1.msra.mxu0 %v1843
  %1867 = vmatprep.subr.mxu0 0.0
  %1868 = vmatpush1.msra.mxu0 %v1844
  %1869 = vmatprep.subr.mxu0 0.0
  %1870 = vmatpush1.msra.mxu0 %v1845
  %1871 = vmatprep.subr.mxu0 0.0
  %1872 = vmatpush1.msra.mxu0 %v1846
  %1873 = vmatprep.subr.mxu0 0.0
  %1874 = vmatpush1.msra.mxu0 %v1847
  %1875 = vmatprep.subr.mxu0 0.0
  %1876 = vmatpush1.msra.mxu0 %v1848
  %1877 = vmatprep.subr.mxu0 0.0
  %1878 = vmatpush1.msra.mxu0 %v1849
  %1879 = vmatprep.subr.mxu0 0.0
  %1880 = vmatpush1.msra.mxu0 %v1850
  %1881 = vmatprep.subr.mxu0 0.0
  %1882 = vmatpush1.msra.mxu0 %v1851
  %1883 = vmatprep.subr.mxu0 0.0
  %1884 = vmatpush1.msra.mxu0 %v1852
  %1885 = vmatprep.subr.mxu0 0.0
  %1886 = vmatpush1.msra.mxu0 %v1853
  %1887 = vmatprep.subr.mxu0 0.0
  %1888 = vmatpush1.msra.mxu0 %v1854
  %1889 = vmatprep.subr.mxu0 0.0
  %1890 = vmatpush1.msra.mxu0 %v1855
  %1891 = vmatprep.subr.mxu0 0.0
  %1892 = vmatpush1.msra.mxu0 %v1856
  %1893 = vmatprep.subr.mxu0 0.0
  %1894 = vmatpush1.msra.mxu0 %v1857
  %1895 = vmatprep.subr.mxu0 0.0
  %1896 = vmatpush1.msra.mxu0 0.0
  %1897 = vmatprep.subr.mxu0 0.0
  %1898 = vmatpush1.msra.mxu0 0.0
  %1899 = vmatprep.subr.mxu0 0.0
  %1900 = vmatpush1.msra.mxu0 0.0
  %1901 = vmatprep.subr.mxu0 0.0
  %1902 = vmatpush1.msra.mxu0 0.0
  %1903 = vmatprep.subr.mxu0 0.0
  %1904 = vmatpush1.msra.mxu0 0.0
  %1905 = vmatprep.subr.mxu0 0.0
  %1906 = vmatpush1.msra.mxu0 0.0
  %1907 = vmatprep.subr.mxu0 0.0
  %1908 = vmatpush1.msra.mxu0 0.0
  %1909 = vmatprep.subr.mxu0 0.0
  %1910 = vmatpush1.msra.mxu0 0.0
  %1911 = vmatprep.subr.mxu0 0.0
  %1912 = vmatpush1.msra.mxu0 0.0
  %1913 = vmatprep.subr.mxu0 0.0
  %1914 = vmatpush1.msra.mxu0 0.0
  %1915 = vmatprep.subr.mxu0 0.0
  %1916 = vmatpush1.msra.mxu0 0.0
  %1917 = vmatprep.subr.mxu0 0.0
  %1918 = vmatpush1.msra.mxu0 0.0
  %1919 = vmatprep.subr.mxu0 0.0
  %1920 = vmatpush1.msra.mxu0 0.0
  %1921 = vmatprep.subr.mxu0 0.0
  %1922 = vmatpush1.msra.mxu0 0.0
  %1923 = vmatprep.subr.mxu0 0.0
  %1924 = vmatpush1.msra.mxu0 0.0
  %1925 = vmatprep.subr.mxu0 0.0
  %1926 = vmatpush1.msra.mxu0 0.0
  %1927 = vmatprep.mubr.f32.mxu0 0.0
  %1928 = vmatmul.mubr.f32.gmra.mrb[0].mxu0 %v1748
  %v1929 = vpop.f32.mrb[0].mxu0
  %v1930 = vadd.f32 %v1862, %v1929
  %v1931 = vpop.f32.mrb[0].mxu0
  %1932 = vdwg.mxu0
  %v1933 = vand.u32 2147483647, %v1838
  %vm1934 = vcmp.gt.f32.partialorder %v1933, 2.4142137
  %vm1935 = vcmp.gt.f32.partialorder %v1933, 0.41421357
  %vm1936 = vmxor %vm1934, 1
  %vm1937 = vmand %vm1935, %vm1936
  %v1938 = vadd.f32 %v1933, 1.0
  %v1939 = vsel %vm1934, %v1933, %v1938
  %v1940 = vrcp.pop %v1939
  %v1941 = vmul.f32 %v1939, %v1940
  %v1942 = vsub.f32 2.0, %v1941
  %v1943 = vmul.f32 %v1940, %v1942
  %v1944 = vsub.f32 0.0, %v1943
  %v1945 = vsub.f32 %v1933, 1.0
  %v1946 = vmul.f32 %v1945, %v1943
  %v1947 = vsel %vm1937, %v1946, %v1933
  %v1948 = vsel %vm1934, %v1944, %v1947
  %v1949 = vsel %vm1937, 0.49951324, 0.0
  %v1950 = vsel %vm1934, 0.9990265, %v1949
  %v1951 = vmul.f32 %v1948, %v1948
  %v1952 = vmul.f32 %v1951, 0.051221814
  %v1953 = vadd.f32 %v1952, -0.08826208
  %v1954 = vmul.f32 %v1953, %v1951
  %v1955 = vadd.f32 %v1954, 0.12705824
  %v1956 = vmul.f32 %v1955, %v1951
  %v1957 = vadd.f32 %v1956, -0.21199755
  %v1958 = vmul.f32 %v1957, %v1951
  %v1959 = vadd.f32 %v1958, 0.636
  %v1960 = vmul.f32 %v1959, %v1948
  %v1961 = vadd.f32 %v1950, %v1960
  %vm1962 = vcmp.lt.f32.partialorder %v1838, 0.0
  %v1963 = vsub.f32 0.0, %v1961
  %v1964 = vsel %vm1962, %v1963, %v1961
  %v1965 = vmul.f32 %v1964, 1.442695
  %v1966 = vpow.pop %v1965
  %v1967 = vmul.f32 %v1966, %v1480
  %v1968 = vadd.f32 %v1967, %v1930
  %v1969 = vadd.f32 %v1481, %v1964
  %v1970 = vsel %vm23, %v1969, 0.0
  %1971 = vadd.xlane.f32.xlu0 %v1970
  %v1972 = vpop.xlane.xlu0 %1971
  %v1973 = vlaneseq
  %v1974 = vand.u32 %v1973, 127
  %vm1975 = vcmp.lt.s32.totalorder %v1974, 8
  %v1976 = vsel %vm1975, %v1968, 0.0
  %vm1977 = vcmp.eq.s32.totalorder %v1974, 8
  %v1978 = vsel %vm1977, %v1972, 0.0
  %v1979 = vadd.f32 %v1976, %v1978
  %1980 = vst.msk [vmem:[%s5] sm:$0xff] %vm23, %v1979
  // Predicated region
  $region22: #{cinn_forward.1} parent=0 // pred_check
    _
  $region23: #{cinn_forward.1} parent=0 // pred_check_branch
    %1982 = sbr.rel (0) target = $region25
  $region24: #{cinn_forward.1} parent=0 // pred_region
    _
  $region25: #{cinn_forward.1} parent=0 // pred_fallthru
    _
  // Predicated region
  $region26: #{cinn_forward.1} parent=0 // pred_check
    _
  $region27: #{cinn_forward.1} parent=0 // pred_check_branch
    %1984 = sbr.rel (0) target = $region29
  $region28: #{cinn_forward.1} parent=0 // pred_region
    _
  $region29: #{cinn_forward.1} parent=0 // pred_fallthru
    _

</llo_original>
